<compile_context>
chip_gen: v6e
topology: v6e:2x2x1
jax: 0.10.0
libtpu: 0.0.40
codegen_flags: <defaults>
</compile_context>

<pallas_src>
import jax
import jax.numpy as jnp
from jax import lax
from jax.experimental import pallas as pl
from jax.experimental.pallas import tpu as pltpu

# ---- hyperparameters (standard reference defaults) ----
AM_MARGIN = 0.3
AM_SCALE = 15.0
MS_THRESH = 0.5
MS_MARGIN = 0.1
MS_SCALE_POS = 2.0
MS_SCALE_NEG = 50.0
COMBINE_WEIGHT = 0.6          # forward(): loss = 0.4*CE + 0.6*ML

_BIG = 1e30
_EPS = 1e-12
_OUT_LANES = 128                      # lane-dense per-row output slabs
_VMEM_LIMIT = 48 * 1024 * 1024        # fits v7x (64 MiB) with headroom; fine on v5e/v6e


# --------------------------- AM-Softmax branch ---------------------------
def _am_kernel(lab_ref, xh_ref, wh_ref, ce_ref, corr_ref,
               m_sc, l_sc, tgt_sc, arg_sc):
    j = pl.program_id(1)
    n_ct = pl.num_programs(1)
    tm = xh_ref.shape[0]
    tc = wh_ref.shape[1]

    @pl.when(j == 0)
    def _init():
        m_sc[...] = jnp.full_like(m_sc, -_BIG)
        l_sc[...] = jnp.zeros_like(l_sc)
        tgt_sc[...] = jnp.zeros_like(tgt_sc)
        arg_sc[...] = jnp.full_like(arg_sc, jnp.int32(-1))

    # Inputs are pre-normalized bf16; one MXU call, f32 accumulation.
    costh = jnp.dot(xh_ref[...], wh_ref[...],
                    preferred_element_type=jnp.float32)           # (tm, tc)

    lab = lab_ref[...]                                            # (tm, 1) int32
    cls = lax.broadcasted_iota(jnp.int32, (tm, tc), 1) + j * tc
    one_hot = cls == lab
    logits = AM_SCALE * costh
    logits = jnp.where(one_hot, logits - AM_SCALE * AM_MARGIN, logits)

    # --- online logsumexp across class tiles ---
    tile_max = jnp.max(logits, axis=1, keepdims=True)
    m_old = m_sc[...]
    m_new = jnp.maximum(m_old, tile_max)
    l_sc[...] = l_sc[...] * jnp.exp(m_old - m_new) + jnp.sum(
        jnp.exp(logits - m_new), axis=1, keepdims=True)
    m_sc[...] = m_new

    # --- running argmax of the margin-adjusted logits (first occurrence wins ties) ---
    tile_arg = jnp.min(jnp.where(logits == tile_max, cls, jnp.int32(2 ** 30)),
                       axis=1, keepdims=True)
    arg_sc[...] = jnp.where(tile_max > m_old, tile_arg, arg_sc[...])

    # --- target logit (exactly one class tile holds each row's label) ---
    tgt_sc[...] = tgt_sc[...] + jnp.sum(jnp.where(one_hot, logits, 0.0),
                                        axis=1, keepdims=True)

    @pl.when(j == n_ct - 1)
    def _finalize():
        lse = m_sc[...] + jnp.log(l_sc[...])
        # lane-dense stores (per-row value replicated across 128 lanes)
        ce_ref[...] = jnp.broadcast_to(lse - tgt_sc[...], ce_ref.shape)
        # TODO(synk): prec1 uses margin-adjusted logits (matches this repo's
        # convention); some ARmSoftmax variants use un-adjusted costh*s.
        corr_ref[...] = jnp.broadcast_to(
            (arg_sc[...] == lab).astype(jnp.float32), corr_ref.shape)


# ------------------------- Multi-Similarity branch -------------------------
def _ms_kernel(labr_ref, labc_ref, xr_ref, xcT_ref, ml_ref,
               minp_sc, maxn_sc, sim_sc):
    i = pl.program_id(0)
    j = pl.program_id(1)
    n_jt = pl.num_programs(1)
    tm = xr_ref.shape[0]
    tn = xcT_ref.shape[1]
    n_total = sim_sc.shape[1]

    @pl.when(j == 0)
    def _init():
        minp_sc[...] = jnp.full_like(minp_sc, _BIG)
        maxn_sc[...] = jnp.full_like(maxn_sc, -_BIG)

    # Plain (tm,d)x(d,tn) MXU matmul on pre-normalized bf16 operands.
    sim = jnp.dot(xr_ref[...], xcT_ref[...],
                  preferred_element_type=jnp.float32)             # (tm, tn)

    # Cache the tile so the exp phase never recomputes the Gram block.
    col0 = pl.multiple_of(j * tn, tn)
    sim_sc[:, pl.ds(col0, tn)] = sim

    labr = labr_ref[...]                                          # (tm, 1)
    labc = labc_ref[:, pl.ds(col0, tn)]                           # (1, tn)
    same = labr == labc
    row_ids = lax.broadcasted_iota(jnp.int32, (tm, tn), 0) + i * tm
    col_ids = lax.broadcasted_iota(jnp.int32, (tm, tn), 1) + j * tn
    pos_mask = jnp.logical_and(same, row_ids != col_ids)          # drop self pairs
    neg_mask = jnp.logical_not(same)

    # running hardest-pair statistics
    minp_sc[...] = jnp.minimum(
        minp_sc[...],
        jnp.min(jnp.where(pos_mask, sim, _BIG), axis=1, keepdims=True))
    maxn_sc[...] = jnp.maximum(
        maxn_sc[...],
        jnp.max(jnp.where(neg_mask, sim, -_BIG), axis=1, keepdims=True))

    @pl.when(j == n_jt - 1)
    def _finalize():
        simf = sim_sc[...]                                        # (tm, N) f32, cached
        labc_full = labc_ref[...]                                 # (1, N)
        same_f = labr == labc_full
        row_f = lax.broadcasted_iota(jnp.int32, (tm, n_total), 0) + i * tm
        col_f = lax.broadcasted_iota(jnp.int32, (tm, n_total), 1)
        pos_f = jnp.logical_and(same_f, row_f != col_f)
        neg_f = jnp.logical_not(same_f)

        pos_sel = jnp.logical_and(pos_f, simf - MS_MARGIN < maxn_sc[...])
        neg_sel = jnp.logical_and(neg_f, simf + MS_MARGIN > minp_sc[...])

        # single exp per element (EUP), routed into pos / neg sums by the masks
        expo = jnp.where(same_f, -MS_SCALE_POS * (simf - MS_THRESH),
                         MS_SCALE_NEG * (simf - MS_THRESH))
        e = jnp.exp(expo)
        ps = jnp.sum(jnp.where(pos_sel, e, 0.0), axis=1, keepdims=True)
        ns = jnp.sum(jnp.where(neg_sel, e, 0.0), axis=1, keepdims=True)

        # TODO(synk): zeroes a row's loss if either selection is empty; verify
        # against MultiSimilarity_v2 (some variants keep the non-empty term).
        valid = jnp.logical_and(ps > 0.0, ns > 0.0).astype(jnp.float32)
        ml = valid * (jnp.log(1.0 + ps) / MS_SCALE_POS
                      + jnp.log(1.0 + ns) / MS_SCALE_NEG)
        ml_ref[...] = jnp.broadcast_to(ml, ml_ref.shape)


# ------------------------------- wrapper -------------------------------
def _pick_tile(dim, pref, quanta):
    """Largest divisor of `dim` that is <= pref and a multiple of a quantum
    (quanta tried in preference order); the full dim when dim <= pref."""
    if dim <= pref:
        return dim
    for q in quanta:
        t = (pref // q) * q
        while t >= q:
            if dim % t == 0:
                return t
            t -= q
    # TODO(synk): pad inputs instead of failing for awkward sizes.
    raise ValueError(f"dimension {dim} cannot be tiled (pref={pref}, quanta={quanta})")


def ms_amsoftmax(x, weight, label, *, tm=None, tc=None, tn=None):
    """MSAmSoftmax.forward: returns (loss, prec1)."""
    n, d = x.shape
    dw, c = weight.shape
    assert dw == d, "weight must be (D, C)"
    label = label.astype(jnp.int32)
    lab_col = label.reshape(n, 1)
    lab_row = label.reshape(1, n)

    # ---- one-time L2 normalization (f32 reduce + rsqrt), bf16 MXU operands ----
    x32 = x.astype(jnp.float32)
    x_hat = (x32 * lax.rsqrt(jnp.sum(x32 * x32, axis=1, keepdims=True) + _EPS)
             ).astype(jnp.bfloat16)                               # (N, D)
    w32 = weight.astype(jnp.float32)
    w_hat = (w32 * lax.rsqrt(jnp.sum(w32 * w32, axis=0, keepdims=True) + _EPS)
             ).astype(jnp.bfloat16)                               # (D, C)
    x_hat_t = x_hat.T                                             # (D, N)

    # Tile selection: MXU-aligned, and tm capped at N/2 so the "parallel" row
    # axis splits across both v7x TensorCores.
    if tm is None:
        pref_m = 256
        if n >= 256:
            pref_m = min(pref_m, n // 2)
        tm = _pick_tile(n, pref_m, (256, 128, 8))
    if tc is None:
        tc = _pick_tile(c, 512, (128,))
    if tn is None:
        tn = _pick_tile(n, 512, (128,))
    assert n % tm == 0 and c % tc == 0 and n % tn == 0
    r_t, c_t, n_t = n // tm, c // tc, n // tn

    # ---- AM-Softmax branch: grid (row tiles, class tiles) ----
    ce_rows, corr_rows = pl.pallas_call(
        _am_kernel,
        out_shape=(jax.ShapeDtypeStruct((n, _OUT_LANES), jnp.float32),
                   jax.ShapeDtypeStruct((n, _OUT_LANES), jnp.float32)),
        grid_spec=pltpu.PrefetchScalarGridSpec(
            num_scalar_prefetch=0,
            grid=(r_t, c_t),
            in_specs=[pl.BlockSpec((tm, 1), lambda i, j: (i, 0)),   # row labels
                      pl.BlockSpec((tm, d), lambda i, j: (i, 0)),   # x_hat row tile (bf16)
                      pl.BlockSpec((d, tc), lambda i, j: (0, j))],  # w_hat class tile (bf16)
            out_specs=(pl.BlockSpec((tm, _OUT_LANES), lambda i, j: (i, 0)),
                       pl.BlockSpec((tm, _OUT_LANES), lambda i, j: (i, 0))),
            scratch_shapes=[pltpu.VMEM((tm, 1), jnp.float32),       # running max
                            pltpu.VMEM((tm, 1), jnp.float32),       # running sum
                            pltpu.VMEM((tm, 1), jnp.float32),       # target logit
                            pltpu.VMEM((tm, 1), jnp.int32)]),       # running argmax
        compiler_params=pltpu.CompilerParams(
            dimension_semantics=("parallel", "arbitrary"),
            vmem_limit_bytes=_VMEM_LIMIT),
    )(lab_col, x_hat, w_hat)

    # ---- Multi-Similarity branch: grid (row tiles, column tiles), sim cached ----
    ml_rows = pl.pallas_call(
        _ms_kernel,
        out_shape=jax.ShapeDtypeStruct((n, _OUT_LANES), jnp.float32),
        grid_spec=pltpu.PrefetchScalarGridSpec(
            num_scalar_prefetch=0,
            grid=(r_t, n_t),
            in_specs=[pl.BlockSpec((tm, 1), lambda i, j: (i, 0)),   # row labels
                      pl.BlockSpec((1, n), lambda i, j: (0, 0)),    # all column labels
                      pl.BlockSpec((tm, d), lambda i, j: (i, 0)),   # x_hat row tile (bf16)
                      pl.BlockSpec((d, tn), lambda i, j: (0, j))],  # x_hat^T col tile (bf16)
            out_specs=pl.BlockSpec((tm, _OUT_LANES), lambda i, j: (i, 0)),
            scratch_shapes=[pltpu.VMEM((tm, 1), jnp.float32),       # running min positive
                            pltpu.VMEM((tm, 1), jnp.float32),       # running max negative
                            pltpu.VMEM((tm, n), jnp.float32)]),     # cached sim row block
        compiler_params=pltpu.CompilerParams(
            dimension_semantics=("parallel", "arbitrary"),
            vmem_limit_bytes=_VMEM_LIMIT),
    )(lab_col, lab_row, x_hat, x_hat_t)

    ce_loss = jnp.sum(ce_rows[:, 0]) / n
    prec1 = jnp.sum(corr_rows[:, 0]) * (100.0 / n)
    ms_loss = jnp.sum(ml_rows[:, 0]) / n
    loss = (1.0 - COMBINE_WEIGHT) * ce_loss + COMBINE_WEIGHT * ms_loss
    return loss, prec1


# --------------------------- pure-JAX reference ---------------------------
def _ref_forward(x, weight, label):
    x = x.astype(jnp.float32)
    w = weight.astype(jnp.float32)
    n = x.shape[0]
    lab_col = label.astype(jnp.int32).reshape(n, 1)

    x_hat = (x * lax.rsqrt(jnp.sum(x * x, axis=1, keepdims=True) + _EPS)
             ).astype(jnp.bfloat16)
    w_hat = (w * lax.rsqrt(jnp.sum(w * w, axis=0, keepdims=True) + _EPS)
             ).astype(jnp.bfloat16)
    costh = jnp.dot(x_hat, w_hat, preferred_element_type=jnp.float32)
    cls = jnp.arange(costh.shape[1], dtype=jnp.int32)[None, :]
    one_hot = cls == lab_col
    logits = AM_SCALE * costh
    logits = jnp.where(one_hot, logits - AM_SCALE * AM_MARGIN, logits)
    lse = jax.nn.logsumexp(logits, axis=1, keepdims=True)
    tgt = jnp.sum(jnp.where(one_hot, logits, 0.0), axis=1, keepdims=True)
    ce = jnp.sum(lse - tgt) / n
    pred = jnp.argmax(logits, axis=1)[:, None]
    prec1 = jnp.sum((pred == lab_col).astype(jnp.float32)) * (100.0 / n)

    sim = jnp.dot(x_hat, x_hat.T, preferred_element_type=jnp.float32)
    same = lab_col == label.reshape(1, n)
    eye = jnp.eye(n, dtype=bool)
    pos_mask = same & ~eye
    neg_mask = ~same
    min_pos = jnp.min(jnp.where(pos_mask, sim, _BIG), axis=1, keepdims=True)
    max_neg = jnp.max(jnp.where(neg_mask, sim, -_BIG), axis=1, keepdims=True)
    pos_sel = pos_mask & (sim - MS_MARGIN < max_neg)
    neg_sel = neg_mask & (sim + MS_MARGIN > min_pos)
    pos_sum = jnp.sum(jnp.where(pos_sel, jnp.exp(-MS_SCALE_POS * (sim - MS_THRESH)), 0.0),
                      axis=1, keepdims=True)
    neg_sum = jnp.sum(jnp.where(neg_sel, jnp.exp(MS_SCALE_NEG * (sim - MS_THRESH)), 0.0),
                      axis=1, keepdims=True)
    valid = ((pos_sum > 0.0) & (neg_sum > 0.0)).astype(jnp.float32)
    ml = jnp.sum(valid * (jnp.log(1.0 + pos_sum) / MS_SCALE_POS
                          + jnp.log(1.0 + neg_sum) / MS_SCALE_NEG)) / n
    return (1.0 - COMBINE_WEIGHT) * ce + COMBINE_WEIGHT * ml, prec1


if __name__ == "__main__":
    key = jax.random.PRNGKey(0)
    kx, kw = jax.random.split(key)

    N, D, C = 256, 64, 512                      # batch, embedding dim, classes
    x = jax.random.normal(kx, (N, D), dtype=jnp.float32)
    std = (2.0 / (D + C)) ** 0.5                # xavier_normal_ for W (D, C)
    W = jax.random.normal(kw, (D, C), dtype=jnp.float32) * std
    label = (jnp.arange(N, dtype=jnp.int32) // 4) % C   # 4 samples per class

    # small tiles so the multi-tile online-accumulation paths are exercised
    loss, prec1 = ms_amsoftmax(x, W, label, tm=128, tc=128, tn=128)
    jax.block_until_ready((loss, prec1))

    ref_loss, ref_prec = _ref_forward(x, W, label)
    assert bool(jnp.isfinite(loss)) and bool(jnp.isfinite(prec1))
    assert abs(float(loss) - float(ref_loss)) < 5e-2, (float(loss), float(ref_loss))
    assert abs(float(prec1) - float(ref_prec)) < 1.0, (float(prec1), float(ref_prec))
    print("KERNEL_OK")
</pallas_src>

<mosaic_0001>
module attributes {stable_mosaic.version = 11 : i64} {
  func.func @_am_kernel(%arg0: i32, %arg1: i32, %arg2: memref<128x1xi32, #tpu.memory_space<vmem>>, %arg3: memref<128x64xbf16, #tpu.memory_space<vmem>>, %arg4: memref<64x128xbf16, #tpu.memory_space<vmem>>, %arg5: memref<128x128xf32, #tpu.memory_space<vmem>>, %arg6: memref<128x128xf32, #tpu.memory_space<vmem>>, %arg7: memref<128x1xf32, #tpu.memory_space<vmem>>, %arg8: memref<128x1xf32, #tpu.memory_space<vmem>>, %arg9: memref<128x1xf32, #tpu.memory_space<vmem>>, %arg10: memref<128x1xi32, #tpu.memory_space<vmem>>) attributes {dimension_semantics = [#tpu.dimension_semantics<parallel>, #tpu.dimension_semantics<arbitrary>], iteration_bounds = array<i64: 2, 4>, scalar_prefetch = 0 : i64, scratch_operands = 4 : i64, tpu.core_type = #tpu.core_type<tc>, window_params = [{transform_indices = @transform_0, window_bounds = array<i64: 128, 1>}, {transform_indices = @transform_1, window_bounds = array<i64: 128, 64>}, {transform_indices = @transform_2, window_bounds = array<i64: 64, 128>}, {transform_indices = @transform_3, window_bounds = array<i64: 128, 128>}, {transform_indices = @transform_4, window_bounds = array<i64: 128, 128>}]} {
    %c0_i32 = arith.constant 0 : i32
    %0 = arith.cmpi eq, %arg1, %c0_i32 : i32
    %1 = arith.extui %0 : i1 to i32
    %c0_i32_0 = arith.constant 0 : i32
    %2 = arith.cmpi ne, %1, %c0_i32_0 : i32
    scf.if %2 {
      %cst_30 = arith.constant -1.000000e+30 : f32
      %54 = vector.broadcast %cst_30 : f32 to vector<128x1xf32>
      %c0_31 = arith.constant 0 : index
      %c0_32 = arith.constant 0 : index
      %55 = vector.load %arg7[%c0_31, %c0_32] : memref<128x1xf32, #tpu.memory_space<vmem>>, vector<128x1xf32>
      tpu.vector_store %arg7[%c0_31, %c0_32], %54 {strides = array<i32>} : memref<128x1xf32, #tpu.memory_space<vmem>>, vector<128x1xf32>,
      %cst_33 = arith.constant 0.000000e+00 : f32
      %56 = vector.broadcast %cst_33 : f32 to vector<128x1xf32>
      %c0_34 = arith.constant 0 : index
      %c0_35 = arith.constant 0 : index
      %57 = vector.load %arg8[%c0_34, %c0_35] : memref<128x1xf32, #tpu.memory_space<vmem>>, vector<128x1xf32>
      tpu.vector_store %arg8[%c0_34, %c0_35], %56 {strides = array<i32>} : memref<128x1xf32, #tpu.memory_space<vmem>>, vector<128x1xf32>,
      %cst_36 = arith.constant 0.000000e+00 : f32
      %58 = vector.broadcast %cst_36 : f32 to vector<128x1xf32>
      %c0_37 = arith.constant 0 : index
      %c0_38 = arith.constant 0 : index
      %59 = vector.load %arg9[%c0_37, %c0_38] : memref<128x1xf32, #tpu.memory_space<vmem>>, vector<128x1xf32>
      tpu.vector_store %arg9[%c0_37, %c0_38], %58 {strides = array<i32>} : memref<128x1xf32, #tpu.memory_space<vmem>>, vector<128x1xf32>,
      %c-1_i32 = arith.constant -1 : i32
      %60 = vector.broadcast %c-1_i32 : i32 to vector<128x1xi32>
      %c0_39 = arith.constant 0 : index
      %c0_40 = arith.constant 0 : index
      %61 = vector.load %arg10[%c0_39, %c0_40] : memref<128x1xi32, #tpu.memory_space<vmem>>, vector<128x1xi32>
      tpu.vector_store %arg10[%c0_39, %c0_40], %60 {strides = array<i32>} : memref<128x1xi32, #tpu.memory_space<vmem>>, vector<128x1xi32>,
    } else {
    }
    %c0 = arith.constant 0 : index
    %c0_1 = arith.constant 0 : index
    %3 = vector.load %arg3[%c0, %c0_1] : memref<128x64xbf16, #tpu.memory_space<vmem>>, vector<128x64xbf16>
    %c0_2 = arith.constant 0 : index
    %c0_3 = arith.constant 0 : index
    %4 = vector.load %arg4[%c0_2, %c0_3] : memref<64x128xbf16, #tpu.memory_space<vmem>>, vector<64x128xbf16>
    %cst = arith.constant dense<0.000000e+00> : vector<128x128xf32>
    %5 = tpu.matmul %3, %4, %cst {dimension_numbers = #tpu.dot_dimension_numbers<[1], [0], [0], [1], [0, 0, 1, 1], [], []>} : vector<128x64xbf16>, vector<64x128xbf16>, vector<128x128xf32> -> vector<128x128xf32>
    %c0_4 = arith.constant 0 : index
    %c0_5 = arith.constant 0 : index
    %6 = vector.load %arg2[%c0_4, %c0_5] : memref<128x1xi32, #tpu.memory_space<vmem>>, vector<128x1xi32>
    %7 = tpu.iota {dimensions = array<i32: 1>} : vector<128x128xi32>
    %c128_i32 = arith.constant 128 : i32
    %8 = arith.muli %arg1, %c128_i32 : i32
    %9 = vector.broadcast %8 : i32 to vector<128x128xi32>
    %10 = arith.addi %7, %9 : vector<128x128xi32>
    %11 = vector.broadcast %6 : vector<128x1xi32> to vector<128x128xi32>
    %12 = arith.cmpi eq, %10, %11 : vector<128x128xi32>
    %cst_6 = arith.constant 1.500000e+01 : f32
    %13 = vector.broadcast %cst_6 : f32 to vector<128x128xf32>
    %14 = arith.mulf %13, %5 : vector<128x128xf32>
    %cst_7 = arith.constant 4.500000e+00 : f32
    %15 = vector.broadcast %cst_7 : f32 to vector<128x128xf32>
    %16 = arith.subf %14, %15 : vector<128x128xf32>
    %17 = arith.select %12, %16, %14 : vector<128x128xi1>, vector<128x128xf32>
    %cst_8 = arith.constant dense<0xFF800000> : vector<128xf32>
    %18 = vector.multi_reduction <maximumf>, %17, %cst_8 [1] : vector<128x128xf32> to vector<128xf32>
    %19 = vector.shape_cast %18 : vector<128xf32> to vector<128x1xf32>
    %c0_9 = arith.constant 0 : index
    %c0_10 = arith.constant 0 : index
    %20 = vector.load %arg7[%c0_9, %c0_10] : memref<128x1xf32, #tpu.memory_space<vmem>>, vector<128x1xf32>
    %21 = arith.maximumf %20, %19 : vector<128x1xf32>
    %c0_11 = arith.constant 0 : index
    %c0_12 = arith.constant 0 : index
    %22 = vector.load %arg8[%c0_11, %c0_12] : memref<128x1xf32, #tpu.memory_space<vmem>>, vector<128x1xf32>
    %23 = arith.subf %20, %21 : vector<128x1xf32>
    %24 = math.exp %23 : vector<128x1xf32>
    %25 = arith.mulf %22, %24 : vector<128x1xf32>
    %26 = vector.broadcast %21 : vector<128x1xf32> to vector<128x128xf32>
    %27 = arith.subf %17, %26 : vector<128x128xf32>
    %28 = math.exp %27 : vector<128x128xf32>
    %cst_13 = arith.constant dense<0.000000e+00> : vector<128xf32>
    %29 = vector.multi_reduction <add>, %28, %cst_13 [1] : vector<128x128xf32> to vector<128xf32>
    %30 = vector.shape_cast %29 : vector<128xf32> to vector<128x1xf32>
    %31 = arith.addf %25, %30 : vector<128x1xf32>
    %c0_14 = arith.constant 0 : index
    %c0_15 = arith.constant 0 : index
    %32 = vector.load %arg8[%c0_14, %c0_15] : memref<128x1xf32, #tpu.memory_space<vmem>>, vector<128x1xf32>
    tpu.vector_store %arg8[%c0_14, %c0_15], %31 {strides = array<i32>} : memref<128x1xf32, #tpu.memory_space<vmem>>, vector<128x1xf32>,
    %c0_16 = arith.constant 0 : index
    %c0_17 = arith.constant 0 : index
    %33 = vector.load %arg7[%c0_16, %c0_17] : memref<128x1xf32, #tpu.memory_space<vmem>>, vector<128x1xf32>
    tpu.vector_store %arg7[%c0_16, %c0_17], %21 {strides = array<i32>} : memref<128x1xf32, #tpu.memory_space<vmem>>, vector<128x1xf32>,
    %34 = vector.broadcast %19 : vector<128x1xf32> to vector<128x128xf32>
    %35 = arith.cmpf oeq, %17, %34 : vector<128x128xf32>
    %c1073741824_i32 = arith.constant 1073741824 : i32
    %36 = vector.broadcast %c1073741824_i32 : i32 to vector<128x128xi32>
    %37 = arith.select %35, %10, %36 : vector<128x128xi1>, vector<128x128xi32>
    %cst_18 = arith.constant dense<2147483647> : vector<128xi32>
    %38 = vector.multi_reduction <minsi>, %37, %cst_18 [1] : vector<128x128xi32> to vector<128xi32>
    %39 = vector.shape_cast %38 : vector<128xi32> to vector<128x1xi32>
    %40 = arith.cmpf ogt, %19, %20 : vector<128x1xf32>
    %c0_19 = arith.constant 0 : index
    %c0_20 = arith.constant 0 : index
    %41 = vector.load %arg10[%c0_19, %c0_20] : memref<128x1xi32, #tpu.memory_space<vmem>>, vector<128x1xi32>
    %42 = arith.select %40, %39, %41 : vector<128x1xi1>, vector<128x1xi32>
    %c0_21 = arith.constant 0 : index
    %c0_22 = arith.constant 0 : index
    %43 = vector.load %arg10[%c0_21, %c0_22] : memref<128x1xi32, #tpu.memory_space<vmem>>, vector<128x1xi32>
    tpu.vector_store %arg10[%c0_21, %c0_22], %42 {strides = array<i32>} : memref<128x1xi32, #tpu.memory_space<vmem>>, vector<128x1xi32>,
    %c0_23 = arith.constant 0 : index
    %c0_24 = arith.constant 0 : index
    %44 = vector.load %arg9[%c0_23, %c0_24] : memref<128x1xf32, #tpu.memory_space<vmem>>, vector<128x1xf32>
    %cst_25 = arith.constant 0.000000e+00 : f32
    %45 = vector.broadcast %cst_25 : f32 to vector<128x128xf32>
    %46 = arith.select %12, %17, %45 : vector<128x128xi1>, vector<128x128xf32>
    %cst_26 = arith.constant dense<0.000000e+00> : vector<128xf32>
    %47 = vector.multi_reduction <add>, %46, %cst_26 [1] : vector<128x128xf32> to vector<128xf32>
    %48 = vector.shape_cast %47 : vector<128xf32> to vector<128x1xf32>
    %49 = arith.addf %44, %48 : vector<128x1xf32>
    %c0_27 = arith.constant 0 : index
    %c0_28 = arith.constant 0 : index
    %50 = vector.load %arg9[%c0_27, %c0_28] : memref<128x1xf32, #tpu.memory_space<vmem>>, vector<128x1xf32>
    tpu.vector_store %arg9[%c0_27, %c0_28], %49 {strides = array<i32>} : memref<128x1xf32, #tpu.memory_space<vmem>>, vector<128x1xf32>,
    %c3_i32 = arith.constant 3 : i32
    %51 = arith.cmpi eq, %arg1, %c3_i32 : i32
    %52 = arith.extui %51 : i1 to i32
    %c0_i32_29 = arith.constant 0 : i32
    %53 = arith.cmpi ne, %52, %c0_i32_29 : i32
    scf.if %53 {
      %c0_30 = arith.constant 0 : index
      %c0_31 = arith.constant 0 : index
      %54 = vector.load %arg7[%c0_30, %c0_31] : memref<128x1xf32, #tpu.memory_space<vmem>>, vector<128x1xf32>
      %c0_32 = arith.constant 0 : index
      %c0_33 = arith.constant 0 : index
      %55 = vector.load %arg8[%c0_32, %c0_33] : memref<128x1xf32, #tpu.memory_space<vmem>>, vector<128x1xf32>
      %56 = math.log %55 : vector<128x1xf32>
      %57 = arith.addf %54, %56 : vector<128x1xf32>
      %c0_34 = arith.constant 0 : index
      %c0_35 = arith.constant 0 : index
      %58 = vector.load %arg9[%c0_34, %c0_35] : memref<128x1xf32, #tpu.memory_space<vmem>>, vector<128x1xf32>
      %59 = arith.subf %57, %58 : vector<128x1xf32>
      %60 = vector.shape_cast %59 : vector<128x1xf32> to vector<128x1xf32>
      %61 = vector.broadcast %60 : vector<128x1xf32> to vector<128x128xf32>
      %c0_36 = arith.constant 0 : index
      %c0_37 = arith.constant 0 : index
      %62 = vector.load %arg5[%c0_36, %c0_37] : memref<128x128xf32, #tpu.memory_space<vmem>>, vector<128x128xf32>
      tpu.vector_store %arg5[%c0_36, %c0_37], %61 {strides = array<i32>} : memref<128x128xf32, #tpu.memory_space<vmem>>, vector<128x128xf32>,
      %c0_38 = arith.constant 0 : index
      %c0_39 = arith.constant 0 : index
      %63 = vector.load %arg10[%c0_38, %c0_39] : memref<128x1xi32, #tpu.memory_space<vmem>>, vector<128x1xi32>
      %64 = arith.cmpi eq, %63, %6 : vector<128x1xi32>
      %65 = arith.extui %64 : vector<128x1xi1> to vector<128x1xi32>
      %66 = arith.sitofp %65 : vector<128x1xi32> to vector<128x1xf32>
      %67 = vector.shape_cast %66 : vector<128x1xf32> to vector<128x1xf32>
      %68 = vector.broadcast %67 : vector<128x1xf32> to vector<128x128xf32>
      %c0_40 = arith.constant 0 : index
      %c0_41 = arith.constant 0 : index
      %69 = vector.load %arg6[%c0_40, %c0_41] : memref<128x128xf32, #tpu.memory_space<vmem>>, vector<128x128xf32>
      tpu.vector_store %arg6[%c0_40, %c0_41], %68 {strides = array<i32>} : memref<128x128xf32, #tpu.memory_space<vmem>>, vector<128x128xf32>,
    } else {
    }
    return
  }
  func.func @transform_0(%arg0: i32, %arg1: i32) -> (i32, i32) {
    %c0_i32 = arith.constant 0 : i32
    %c0_i32_0 = arith.constant 0 : i32
    return %arg0, %c0_i32 : i32, i32
  }
  func.func @transform_1(%arg0: i32, %arg1: i32) -> (i32, i32) {
    %c0_i32 = arith.constant 0 : i32
    %c0_i32_0 = arith.constant 0 : i32
    return %arg0, %c0_i32 : i32, i32
  }
  func.func @transform_2(%arg0: i32, %arg1: i32) -> (i32, i32) {
    %c0_i32 = arith.constant 0 : i32
    %c0_i32_0 = arith.constant 0 : i32
    return %c0_i32, %arg1 : i32, i32
  }
  func.func @transform_3(%arg0: i32, %arg1: i32) -> (i32, i32) {
    %c0_i32 = arith.constant 0 : i32
    %c0_i32_0 = arith.constant 0 : i32
    return %arg0, %c0_i32 : i32, i32
  }
  func.func @transform_4(%arg0: i32, %arg1: i32) -> (i32, i32) {
    %c0_i32 = arith.constant 0 : i32
    %c0_i32_0 = arith.constant 0 : i32
    return %arg0, %c0_i32 : i32, i32
  }
}

</mosaic_0001>

<llo_original>
// kernel: tpu_custom_call.1
$region0: #{tpu_custom_call.1}
  #allocation0 [shape = 'u32[]', space=smem, size = 0x4, offset = 0x4, fixed_abs, tag = 'smem constant byte address 0x4 - core index']
  #allocation1 [shape = 'u32[144,128]{1,0:T(1,128)}', space=vmem, size = 0x12000, scoped, tag = 'internal scratch']
  #allocation2 [shape = 'f32[128,1]{1,0:T(8,128)}', space=vmem, size = 0x10000, scoped, tag = 'scratch operand']
  #allocation3 [shape = 'f32[128,1]{1,0:T(8,128)}', space=vmem, size = 0x10000, scoped, tag = 'scratch operand']
  #allocation4 [shape = 'f32[128,1]{1,0:T(8,128)}', space=vmem, size = 0x10000, scoped, tag = 'scratch operand']
  #allocation5 [shape = 's32[128,1]{1,0:T(8,128)}', space=vmem, size = 0x10000, scoped, tag = 'scratch operand']
  %s0 = inlined_call_operand.vmem [shape: s32[256,1], index: 0, kind: input, shape index: {}]
  %s1 = inlined_call_operand.vmem [shape: bf16[256,64], index: 1, kind: input, shape index: {}]
  %s2 = inlined_call_operand.vmem [shape: bf16[64,512], index: 2, kind: input, shape index: {}]
  %s3 = inlined_call_operand.hbm [shape: f32[256,128], index: 3, kind: output, shape index: {0}]
  %s4 = inlined_call_operand.hbm [shape: f32[256,128], index: 4, kind: output, shape index: {1}]
  %5 = xla_tuple %s3, %s4
  %s6 = sld [smem:[#allocation0]]
  $region102: #{tpu_custom_call.1} parent=0
    _
  %s8 = ssub.s32 1, %s6
  %s9 = scalar_select 0, %s8, %s6
  $region1: #{tpu_custom_call.1} parent=0
    #allocation6 [shape = 'u8[32768]{0}', space=vmem, size = 0x8000, scoped, tag = 'input window, operand 2']
    #allocation7 [shape = 'u8[131072]{0}', space=vmem, size = 0x20000, scoped, tag = 'output window, operand 0']
    #allocation8 [shape = 's32[2]{0}', space=sflag, size = 0x8, scoped, tag = 'scoped memory for tpu_custom_call.1']
    #allocation9 [shape = 'u8[131072]{0}', space=vmem, size = 0x20000, scoped, tag = 'output window, operand 1']
    #allocation10 [shape = 's32[2]{0}', space=sflag, size = 0x8, scoped, tag = 'scoped memory for tpu_custom_call.1']
    %10 = vsyncpa [#allocation8], 0
    %s11 = scalar_lea.sflag [#allocation8], 1
    %12 = vsyncpa %s11, 0
    %13 = vsyncpa [#allocation10], 0
    %s14 = scalar_lea.sflag [#allocation10], 1
    %15 = vsyncpa %s14, 0
    loop: start=0, step=1, limit=10
    $region2: #{tpu_custom_call.1} parent=1 // loop_pre_header
      _
    $region3: #{tpu_custom_call.1} parent=1 // loop_header
      %s17 = sphi 0, %s21
      %p18 = scmp.ge.s32.totalorder %s17, 10
      %s24 = sphi 0, %s36
      %s25 = sphi 0, %s32
      %s26 = sphi 0, %s24
      %s27 = sphi 0, %s25
      %s28 = sphi 0, %s26
      %s29 = sphi 0, %s27
      %s39 = sphi 0, %s41
      %s42 = sphi 0, %s39
      %s43 = sphi 0, %s42
      %s59 = sphi 0, %s43
      %s65 = sphi 0, %s67
      %s68 = sphi 0, %s65
      %s69 = sphi 0, %s68
      %s85 = sphi 0, %s69
      %s91 = sphi 0, %s93
      %s94 = sphi 0, %s91
      %s95 = sphi 0, %s94
      %s111 = sphi 0, %s95
      %s117 = sphi 0, %s119
      %s120 = sphi 0, %s117
      %s121 = sphi 0, %s120
      %s137 = sphi 0, %s121
      %s143 = sphi 0, %s145
      %s146 = sphi 0, %s143
      %s147 = sphi 0, %s146
      %s163 = sphi 0, %s147
    $region4: #{tpu_custom_call.1} parent=1 // loop_header_branch
      %20 = sbr.rel (%p18) target = $region8
    $region5: #{tpu_custom_call.1} parent=1 // loop_body
      %s22 = ssub.s32 %s17, 1
      %s23 = ssub.s32 %s17, 2
      %s30 = sadd.s32 1, %s25
      %p31 = scmp.ge.s32.totalorder %s30, 4
      %s32 = scalar_select %p31, 0, %s30
      %s33 = sadd.s32 1, %s24
      %s34 = scalar_select %p31, %s33, %s24
      %p35 = scmp.ge.s32.totalorder %s34, 2
      %s36 = scalar_select %p35, 0, %s34
      %s37 = ssub.s32 %s24, %s36
      %p38 = scmp.eq.s32.totalorder %s37, 0
      %s40 = sadd.s32 %s39, 1
      %s41 = scalar_select %p38, %s39, %s40
      %p44 = pneg %p38
      %p45 = scmp.eq.s32.totalorder %s17, 7
      %p46 = por %p44, %p45
      %p47 = scmp.ne.s32.totalorder %s39, %s42
      %p48 = scmp.eq.s32.totalorder %s17, 0
      %p49 = por %p47, %p48
      %p50 = scmp.ne.s32.totalorder %s39, %s42
      %p51 = scmp.eq.s32.totalorder %s22, 7
      %p52 = por %p50, %p51
      %p53 = scmp.ne.s32.totalorder %s42, %s43
      %p54 = scmp.eq.s32.totalorder %s22, 0
      %p55 = por %p53, %p54
      %p56 = scmp.ne.s32.totalorder %s42, %s43
      %p57 = scmp.eq.s32.totalorder %s23, 7
      %p58 = por %p56, %p57
      %p60 = scmp.ne.s32.totalorder %s43, %s59
      %p61 = scmp.eq.s32.totalorder %s23, 0
      %p62 = por %p60, %p61
      %s63 = ssub.s32 %s24, %s36
      %p64 = scmp.eq.s32.totalorder %s63, 0
      %s66 = sadd.s32 %s65, 1
      %s67 = scalar_select %p64, %s65, %s66
      %p70 = pneg %p64
      %p71 = scmp.eq.s32.totalorder %s17, 7
      %p72 = por %p70, %p71
      %p73 = scmp.ne.s32.totalorder %s65, %s68
      %p74 = scmp.eq.s32.totalorder %s17, 0
      %p75 = por %p73, %p74
      %p76 = scmp.ne.s32.totalorder %s65, %s68
      %p77 = scmp.eq.s32.totalorder %s22, 7
      %p78 = por %p76, %p77
      %p79 = scmp.ne.s32.totalorder %s68, %s69
      %p80 = scmp.eq.s32.totalorder %s22, 0
      %p81 = por %p79, %p80
      %p82 = scmp.ne.s32.totalorder %s68, %s69
      %p83 = scmp.eq.s32.totalorder %s23, 7
      %p84 = por %p82, %p83
      %p86 = scmp.ne.s32.totalorder %s69, %s85
      %p87 = scmp.eq.s32.totalorder %s23, 0
      %p88 = por %p86, %p87
      %s89 = ssub.s32 %s25, %s32
      %p90 = scmp.eq.s32.totalorder %s89, 0
      %s92 = sadd.s32 %s91, 1
      %s93 = scalar_select %p90, %s91, %s92
      %p96 = pneg %p90
      %p97 = scmp.eq.s32.totalorder %s17, 7
      %p98 = por %p96, %p97
      %p99 = scmp.ne.s32.totalorder %s91, %s94
      %p100 = scmp.eq.s32.totalorder %s17, 0
      %p101 = por %p99, %p100
      %p102 = scmp.ne.s32.totalorder %s91, %s94
      %p103 = scmp.eq.s32.totalorder %s22, 7
      %p104 = por %p102, %p103
      %p105 = scmp.ne.s32.totalorder %s94, %s95
      %p106 = scmp.eq.s32.totalorder %s22, 0
      %p107 = por %p105, %p106
      %p108 = scmp.ne.s32.totalorder %s94, %s95
      %p109 = scmp.eq.s32.totalorder %s23, 7
      %p110 = por %p108, %p109
      %p112 = scmp.ne.s32.totalorder %s95, %s111
      %p113 = scmp.eq.s32.totalorder %s23, 0
      %p114 = por %p112, %p113
      %s115 = ssub.s32 %s24, %s36
      %p116 = scmp.eq.s32.totalorder %s115, 0
      %s118 = sadd.s32 %s117, 1
      %s119 = scalar_select %p116, %s117, %s118
      %p122 = pneg %p116
      %p123 = scmp.eq.s32.totalorder %s17, 7
      %p124 = por %p122, %p123
      %p125 = scmp.ne.s32.totalorder %s117, %s120
      %p126 = scmp.eq.s32.totalorder %s17, 0
      %p127 = por %p125, %p126
      %p128 = scmp.ne.s32.totalorder %s117, %s120
      %p129 = scmp.eq.s32.totalorder %s22, 7
      %p130 = por %p128, %p129
      %p131 = scmp.ne.s32.totalorder %s120, %s121
      %p132 = scmp.eq.s32.totalorder %s22, 0
      %p133 = por %p131, %p132
      %p134 = scmp.ne.s32.totalorder %s120, %s121
      %p135 = scmp.eq.s32.totalorder %s23, 7
      %p136 = por %p134, %p135
      %p138 = scmp.ne.s32.totalorder %s121, %s137
      %p139 = scmp.eq.s32.totalorder %s23, 0
      %p140 = por %p138, %p139
      %s141 = ssub.s32 %s24, %s36
      %p142 = scmp.eq.s32.totalorder %s141, 0
      %s144 = sadd.s32 %s143, 1
      %s145 = scalar_select %p142, %s143, %s144
      %p148 = pneg %p142
      %p149 = scmp.eq.s32.totalorder %s17, 7
      %p150 = por %p148, %p149
      %p151 = scmp.ne.s32.totalorder %s143, %s146
      %p152 = scmp.eq.s32.totalorder %s17, 0
      %p153 = por %p151, %p152
      %p154 = scmp.ne.s32.totalorder %s143, %s146
      %p155 = scmp.eq.s32.totalorder %s22, 7
      %p156 = por %p154, %p155
      %p157 = scmp.ne.s32.totalorder %s146, %s147
      %p158 = scmp.eq.s32.totalorder %s22, 0
      %p159 = por %p157, %p158
      %p160 = scmp.ne.s32.totalorder %s146, %s147
      %p161 = scmp.eq.s32.totalorder %s23, 7
      %p162 = por %p160, %p161
      %p164 = scmp.ne.s32.totalorder %s147, %s163
      %p165 = scmp.eq.s32.totalorder %s23, 0
      %p166 = por %p164, %p165
      %p167 = scmp.le.s32.totalorder 1, %s17
      %p168 = scmp.lt.s32.totalorder %s17, 9
      %p169 = pnand %p167, %p168
      %p170 = pneg %p169
      // Predicated region
      $region9: #{tpu_custom_call.1} parent=5 // pred_check
        _
      $region10: #{tpu_custom_call.1} parent=5 // pred_check_branch
        %172 = sbr.rel (%p169) target = $region12
      $region11: #{tpu_custom_call.1} parent=5 // pred_region
        %s173 = ssub.s32 %s17, 1
      $region12: #{tpu_custom_call.1} parent=5 // pred_fallthru
        _
      %p174 = scmp.lt.s32.totalorder %s17, 8
      // Predicated region
      $region13: #{tpu_custom_call.1} parent=5 // pred_check
        %p175 = pneg %p174
      $region14: #{tpu_custom_call.1} parent=5 // pred_check_branch
        %177 = sbr.rel (%p175) target = $region16
      $region15: #{tpu_custom_call.1} parent=5 // pred_region
        // Predicated region
        $region17: #{tpu_custom_call.1} parent=15 // pred_check
          %p178 = pneg %p49
        $region18: #{tpu_custom_call.1} parent=15 // pred_check_branch
          %180 = sbr.rel (%p178) target = $region20
        $region19: #{tpu_custom_call.1} parent=15 // pred_region
          %s181 = smul.u32 16, %s24
          %p182 = scmp.lt.s32.totalorder %s181, 31
          %s183 = scalar_select %p182, %s181, 31
          %s184 = smul.addr %s183, 8
          %s185 = scalar_lea.vmem %s0, %s184
          %s186 = smul.u32 16, %s24
        $region20: #{tpu_custom_call.1} parent=15 // pred_fallthru
          _
        // Predicated region
        $region21: #{tpu_custom_call.1} parent=15 // pred_check
          %p187 = pneg %p75
        $region22: #{tpu_custom_call.1} parent=15 // pred_check_branch
          %189 = sbr.rel (%p187) target = $region24
        $region23: #{tpu_custom_call.1} parent=15 // pred_region
          %s190 = smul.u32 16, %s24
          %p191 = scmp.lt.s32.totalorder %s190, 31
          %s192 = scalar_select %p191, %s190, 31
          %s193 = smul.addr %s192, 4
          %s194 = scalar_lea.vmem %s1, %s193
          %s195 = smul.u32 16, %s24
        $region24: #{tpu_custom_call.1} parent=15 // pred_fallthru
          _
        // Predicated region
        $region25: #{tpu_custom_call.1} parent=15 // pred_check
          %p196 = pneg %p101
        $region26: #{tpu_custom_call.1} parent=15 // pred_check_branch
          %198 = sbr.rel (%p196) target = $region28
        $region27: #{tpu_custom_call.1} parent=15 // pred_region
          %s199 = sand.u32 %s91, 1
          %s200 = sand.u32 %s91, 1
          %s201 = smul.addr %s200, 32
          %s202 = scalar_lea.vmem [#allocation6], %s201
          %s203 = smul.addr %s25, 4
          %s204 = scalar_lea.vmem %s2, %s203
          // Predicated region
          $region29: #{tpu_custom_call.1} parent=27 // pred_check
            _
          $region30: #{tpu_custom_call.1} parent=27 // pred_check_branch
            %206 = sbr.rel (0) target = $region32
          $region31: #{tpu_custom_call.1} parent=27 // pred_region
            // Predicated region
            $region33: #{tpu_custom_call.1} parent=31 // pred_check
              _
            $region34: #{tpu_custom_call.1} parent=31 // pred_check_branch
              %208 = sbr.rel target = $region36
            $region35: #{tpu_custom_call.1} parent=31 // pred_region
              // Predicated region
              $region48: #{tpu_custom_call.1} parent=35 // pred_check
                _
              $region49: #{tpu_custom_call.1} parent=35 // pred_check_branch
                %238 = sbr.rel (0) target = $region51
              $region50: #{tpu_custom_call.1} parent=35 // pred_region
                loop: start=0, step=1, limit=1
                $region52: #{tpu_custom_call.1} parent=50 // loop_pre_header
                  _
                $region53: #{tpu_custom_call.1} parent=50 // loop_header
                  %s240 = sphi 0, %s244
                  %p241 = scmp.ge.s32.totalorder %s240, 1
                  %s245 = sphi %s204, %s204
                  %s246 = sphi %s202, %s202
                $region54: #{tpu_custom_call.1} parent=50 // loop_header_branch
                  %243 = sbr.rel (%p241) target = $region58
                $region55: #{tpu_custom_call.1} parent=50 // loop_body
                  _
                $region56: #{tpu_custom_call.1} parent=50 // loop_footer
                  %s244 = sadd.s32 1, %s240
                $region57: #{tpu_custom_call.1} parent=50 // loop_footer_branch
                  %239 = sbr.rel target = $region53
                $region58: #{tpu_custom_call.1} parent=50 // loop_exit
                  _
                %s248 = ssub.s32 16, 1
                loop: start=0, step=1, limit=1
                $region59: #{tpu_custom_call.1} parent=50 // loop_pre_header
                  _
                $region60: #{tpu_custom_call.1} parent=50 // loop_header
                  %s250 = sphi 0, %s254
                  %p251 = scmp.ge.s32.totalorder %s250, 1
                  %s255 = sphi %s204, %s204
                  %s256 = sphi %s202, %s202
                $region61: #{tpu_custom_call.1} parent=50 // loop_header_branch
                  %253 = sbr.rel (%p251) target = $region65
                $region62: #{tpu_custom_call.1} parent=50 // loop_body
                  %v257 = vld [vmem:[%s255] sm:%s248]
                  %258 = vst [vmem:[%s256] sm:%s248] %v257
                  %v259 = vld [vmem:[%s255 + $0x10] sm:%s248]
                  %260 = vst [vmem:[%s256 + $0x4] sm:%s248] %v259
                  %v261 = vld [vmem:[%s255 + $0x20] sm:%s248]
                  %262 = vst [vmem:[%s256 + $0x8] sm:%s248] %v261
                  %v263 = vld [vmem:[%s255 + $0x30] sm:%s248]
                  %264 = vst [vmem:[%s256 + $0xc] sm:%s248] %v263
                  %v265 = vld [vmem:[%s255 + $0x40] sm:%s248]
                  %266 = vst [vmem:[%s256 + $0x10] sm:%s248] %v265
                  %v267 = vld [vmem:[%s255 + $0x50] sm:%s248]
                  %268 = vst [vmem:[%s256 + $0x14] sm:%s248] %v267
                  %v269 = vld [vmem:[%s255 + $0x60] sm:%s248]
                  %270 = vst [vmem:[%s256 + $0x18] sm:%s248] %v269
                  %v271 = vld [vmem:[%s255 + $0x70] sm:%s248]
                  %272 = vst [vmem:[%s256 + $0x1c] sm:%s248] %v271
                $region63: #{tpu_custom_call.1} parent=50 // loop_footer
                  %s254 = sadd.s32 1, %s250
                $region64: #{tpu_custom_call.1} parent=50 // loop_footer_branch
                  %249 = sbr.rel target = $region60
                $region65: #{tpu_custom_call.1} parent=50 // loop_exit
                  _
              $region51: #{tpu_custom_call.1} parent=35 // pred_fallthru
                _
            $region36: #{tpu_custom_call.1} parent=31 // pred_fallthru
              _
            // Predicated region
            $region37: #{tpu_custom_call.1} parent=31 // pred_check
              _
            $region38: #{tpu_custom_call.1} parent=31 // pred_check_branch
              %210 = sbr.rel (0) target = $region40
            $region39: #{tpu_custom_call.1} parent=31 // pred_region
              %s212 = ssub.s32 16, 1
              loop: start=0, step=1, limit=1
              $region41: #{tpu_custom_call.1} parent=39 // loop_pre_header
                _
              $region42: #{tpu_custom_call.1} parent=39 // loop_header
                %s214 = sphi 0, %s218
                %p215 = scmp.ge.s32.totalorder %s214, 1
                %s219 = sphi %s204, %s204
                %s220 = sphi %s202, %s202
              $region43: #{tpu_custom_call.1} parent=39 // loop_header_branch
                %217 = sbr.rel (%p215) target = $region47
              $region44: #{tpu_custom_call.1} parent=39 // loop_body
                %v221 = vld [vmem:[%s219] sm:%s212]
                %222 = vst [vmem:[%s220] sm:%s212] %v221
                %v223 = vld [vmem:[%s219 + $0x10] sm:%s212]
                %224 = vst [vmem:[%s220 + $0x4] sm:%s212] %v223
                %v225 = vld [vmem:[%s219 + $0x20] sm:%s212]
                %226 = vst [vmem:[%s220 + $0x8] sm:%s212] %v225
                %v227 = vld [vmem:[%s219 + $0x30] sm:%s212]
                %228 = vst [vmem:[%s220 + $0xc] sm:%s212] %v227
                %v229 = vld [vmem:[%s219 + $0x40] sm:%s212]
                %230 = vst [vmem:[%s220 + $0x10] sm:%s212] %v229
                %v231 = vld [vmem:[%s219 + $0x50] sm:%s212]
                %232 = vst [vmem:[%s220 + $0x14] sm:%s212] %v231
                %v233 = vld [vmem:[%s219 + $0x60] sm:%s212]
                %234 = vst [vmem:[%s220 + $0x18] sm:%s212] %v233
                %v235 = vld [vmem:[%s219 + $0x70] sm:%s212]
                %236 = vst [vmem:[%s220 + $0x1c] sm:%s212] %v235
              $region45: #{tpu_custom_call.1} parent=39 // loop_footer
                %s218 = sadd.s32 1, %s214
              $region46: #{tpu_custom_call.1} parent=39 // loop_footer_branch
                %213 = sbr.rel target = $region42
              $region47: #{tpu_custom_call.1} parent=39 // loop_exit
                _
            $region40: #{tpu_custom_call.1} parent=31 // pred_fallthru
              _
          $region32: #{tpu_custom_call.1} parent=27 // pred_fallthru
            _
          %273 = vnop
        $region28: #{tpu_custom_call.1} parent=15 // pred_fallthru
          _
      $region16: #{tpu_custom_call.1} parent=5 // pred_fallthru
        _
      %p274 = scmp.le.s32.totalorder 1, %s17
      %p275 = scmp.lt.s32.totalorder %s17, 9
      %p276 = pnand %p274, %p275
      %p277 = pneg %p276
      // Predicated region
      $region66: #{tpu_custom_call.1} parent=5 // pred_check
        _
      $region67: #{tpu_custom_call.1} parent=5 // pred_check_branch
        %279 = sbr.rel (%p276) target = $region69
      $region68: #{tpu_custom_call.1} parent=5 // pred_region
        %s280 = ssub.s32 %s17, 1
        %s281 = sand.u32 %s94, 1
        %s282 = sand.u32 %s94, 1
        %s283 = smul.addr %s282, 32
        %s284 = scalar_lea.vmem [#allocation6], %s283
        // Predicated region
        $region70: #{tpu_custom_call.1} parent=68 // pred_check
          %p285 = pneg %p107
        $region71: #{tpu_custom_call.1} parent=68 // pred_check_branch
          %287 = sbr.rel (%p285) target = $region73
        $region72: #{tpu_custom_call.1} parent=68 // pred_region
          _
        $region73: #{tpu_custom_call.1} parent=68 // pred_fallthru
          _
        %s288 = smul.u32 16, %s26
        %p289 = scmp.lt.s32.totalorder %s288, 31
        %s290 = scalar_select %p289, %s288, 31
        %s291 = smul.addr %s290, 8
        %s292 = scalar_lea.vmem %s0, %s291
        %p293 = pneg %p55
        %p294 = pneg %p52
        %s295 = smul.u32 16, %s26
        %p296 = scmp.lt.s32.totalorder %s295, 31
        %s297 = scalar_select %p296, %s295, 31
        %s298 = smul.addr %s297, 4
        %s299 = scalar_lea.vmem %s1, %s298
        %p300 = pneg %p81
        %p301 = pneg %p78
        %s302 = sand.u32 %s94, 1
        %s303 = sand.u32 %s94, 1
        %s304 = smul.addr %s303, 32
        %s305 = scalar_lea.vmem [#allocation6], %s304
        %p306 = pneg %p107
        %p307 = pneg %p104
        %p308 = pneg %p133
        %p309 = pneg %p130
        %s310 = sand.u32 %s120, 1
        %s311 = scalar_lea.sflag [#allocation8], %s310
        %s312 = sand.u32 %s120, 1
        %s313 = smul.addr %s312, 128
        %s314 = scalar_lea.vmem [#allocation7], %s313
        %p315 = pneg %p159
        %p316 = pneg %p156
        %s317 = sand.u32 %s146, 1
        %s318 = scalar_lea.sflag [#allocation10], %s317
        %s319 = sand.u32 %s146, 1
        %s320 = smul.addr %s319, 128
        %s321 = scalar_lea.vmem [#allocation9], %s320
        %s322 = smul.u32 16, %s26
        %p323 = scmp.lt.s32.totalorder %s322, 31
        %s324 = scalar_select %p323, %s322, 31
        %s325 = smul.addr %s324, 8
        %s326 = scalar_lea.vmem %s0, %s325
        %s327 = smul.u32 16, %s26
        %s328 = smul.u32 16, %s26
        %p329 = scmp.lt.s32.totalorder %s328, 31
        %s330 = scalar_select %p329, %s328, 31
        %s331 = smul.addr %s330, 4
        %s332 = scalar_lea.vmem %s1, %s331
        %s333 = smul.u32 16, %s26
        %s334 = smul.u32 16, %s26
        %s335 = smul.u32 16, %s26
        %p337 = scmp.eq.s32.totalorder %s27, 0
        // Predicated region
        $region74: #{tpu_custom_call.1} parent=68 // pred_check
          %p338 = pneg %p337
        $region75: #{tpu_custom_call.1} parent=68 // pred_check_branch
          %340 = sbr.rel (%p338) target = $region77
        $region76: #{tpu_custom_call.1} parent=68 // pred_region
          %vm341 = vcmask 7168
          %342 = vst.msk [vmem:[#allocation2] sm:$0xff] %vm341, -1e+30
          %343 = vst.msk [vmem:[#allocation2 + $0x8] sm:$0xff] %vm341, -1e+30
          %344 = vst.msk [vmem:[#allocation2 + $0x10] sm:$0xff] %vm341, -1e+30
          %345 = vst.msk [vmem:[#allocation2 + $0x18] sm:$0xff] %vm341, -1e+30
          %346 = vst.msk [vmem:[#allocation2 + $0x20] sm:$0xff] %vm341, -1e+30
          %347 = vst.msk [vmem:[#allocation2 + $0x28] sm:$0xff] %vm341, -1e+30
          %348 = vst.msk [vmem:[#allocation2 + $0x30] sm:$0xff] %vm341, -1e+30
          %349 = vst.msk [vmem:[#allocation2 + $0x38] sm:$0xff] %vm341, -1e+30
          %350 = vst.msk [vmem:[#allocation2 + $0x40] sm:$0xff] %vm341, -1e+30
          %351 = vst.msk [vmem:[#allocation2 + $0x48] sm:$0xff] %vm341, -1e+30
          %352 = vst.msk [vmem:[#allocation2 + $0x50] sm:$0xff] %vm341, -1e+30
          %353 = vst.msk [vmem:[#allocation2 + $0x58] sm:$0xff] %vm341, -1e+30
          %354 = vst.msk [vmem:[#allocation2 + $0x60] sm:$0xff] %vm341, -1e+30
          %355 = vst.msk [vmem:[#allocation2 + $0x68] sm:$0xff] %vm341, -1e+30
          %356 = vst.msk [vmem:[#allocation2 + $0x70] sm:$0xff] %vm341, -1e+30
          %357 = vst.msk [vmem:[#allocation2 + $0x78] sm:$0xff] %vm341, -1e+30
          %358 = vst.msk [vmem:[#allocation3] sm:$0xff] %vm341, 0.0
          %359 = vst.msk [vmem:[#allocation3 + $0x8] sm:$0xff] %vm341, 0.0
          %360 = vst.msk [vmem:[#allocation3 + $0x10] sm:$0xff] %vm341, 0.0
          %361 = vst.msk [vmem:[#allocation3 + $0x18] sm:$0xff] %vm341, 0.0
          %362 = vst.msk [vmem:[#allocation3 + $0x20] sm:$0xff] %vm341, 0.0
          %363 = vst.msk [vmem:[#allocation3 + $0x28] sm:$0xff] %vm341, 0.0
          %364 = vst.msk [vmem:[#allocation3 + $0x30] sm:$0xff] %vm341, 0.0
          %365 = vst.msk [vmem:[#allocation3 + $0x38] sm:$0xff] %vm341, 0.0
          %366 = vst.msk [vmem:[#allocation3 + $0x40] sm:$0xff] %vm341, 0.0
          %367 = vst.msk [vmem:[#allocation3 + $0x48] sm:$0xff] %vm341, 0.0
          %368 = vst.msk [vmem:[#allocation3 + $0x50] sm:$0xff] %vm341, 0.0
          %369 = vst.msk [vmem:[#allocation3 + $0x58] sm:$0xff] %vm341, 0.0
          %370 = vst.msk [vmem:[#allocation3 + $0x60] sm:$0xff] %vm341, 0.0
          %371 = vst.msk [vmem:[#allocation3 + $0x68] sm:$0xff] %vm341, 0.0
          %372 = vst.msk [vmem:[#allocation3 + $0x70] sm:$0xff] %vm341, 0.0
          %373 = vst.msk [vmem:[#allocation3 + $0x78] sm:$0xff] %vm341, 0.0
          %374 = vst.msk [vmem:[#allocation4] sm:$0xff] %vm341, 0.0
          %375 = vst.msk [vmem:[#allocation4 + $0x8] sm:$0xff] %vm341, 0.0
          %376 = vst.msk [vmem:[#allocation4 + $0x10] sm:$0xff] %vm341, 0.0
          %377 = vst.msk [vmem:[#allocation4 + $0x18] sm:$0xff] %vm341, 0.0
          %378 = vst.msk [vmem:[#allocation4 + $0x20] sm:$0xff] %vm341, 0.0
          %379 = vst.msk [vmem:[#allocation4 + $0x28] sm:$0xff] %vm341, 0.0
          %380 = vst.msk [vmem:[#allocation4 + $0x30] sm:$0xff] %vm341, 0.0
          %381 = vst.msk [vmem:[#allocation4 + $0x38] sm:$0xff] %vm341, 0.0
          %382 = vst.msk [vmem:[#allocation4 + $0x40] sm:$0xff] %vm341, 0.0
          %383 = vst.msk [vmem:[#allocation4 + $0x48] sm:$0xff] %vm341, 0.0
          %384 = vst.msk [vmem:[#allocation4 + $0x50] sm:$0xff] %vm341, 0.0
          %385 = vst.msk [vmem:[#allocation4 + $0x58] sm:$0xff] %vm341, 0.0
          %386 = vst.msk [vmem:[#allocation4 + $0x60] sm:$0xff] %vm341, 0.0
          %387 = vst.msk [vmem:[#allocation4 + $0x68] sm:$0xff] %vm341, 0.0
          %388 = vst.msk [vmem:[#allocation4 + $0x70] sm:$0xff] %vm341, 0.0
          %389 = vst.msk [vmem:[#allocation4 + $0x78] sm:$0xff] %vm341, 0.0
          %390 = vst.msk [vmem:[#allocation5] sm:$0xff] %vm341, 4294967295
          %391 = vst.msk [vmem:[#allocation5 + $0x8] sm:$0xff] %vm341, 4294967295
          %392 = vst.msk [vmem:[#allocation5 + $0x10] sm:$0xff] %vm341, 4294967295
          %393 = vst.msk [vmem:[#allocation5 + $0x18] sm:$0xff] %vm341, 4294967295
          %394 = vst.msk [vmem:[#allocation5 + $0x20] sm:$0xff] %vm341, 4294967295
          %395 = vst.msk [vmem:[#allocation5 + $0x28] sm:$0xff] %vm341, 4294967295
          %396 = vst.msk [vmem:[#allocation5 + $0x30] sm:$0xff] %vm341, 4294967295
          %397 = vst.msk [vmem:[#allocation5 + $0x38] sm:$0xff] %vm341, 4294967295
          %398 = vst.msk [vmem:[#allocation5 + $0x40] sm:$0xff] %vm341, 4294967295
          %399 = vst.msk [vmem:[#allocation5 + $0x48] sm:$0xff] %vm341, 4294967295
          %400 = vst.msk [vmem:[#allocation5 + $0x50] sm:$0xff] %vm341, 4294967295
          %401 = vst.msk [vmem:[#allocation5 + $0x58] sm:$0xff] %vm341, 4294967295
          %402 = vst.msk [vmem:[#allocation5 + $0x60] sm:$0xff] %vm341, 4294967295
          %403 = vst.msk [vmem:[#allocation5 + $0x68] sm:$0xff] %vm341, 4294967295
          %404 = vst.msk [vmem:[#allocation5 + $0x70] sm:$0xff] %vm341, 4294967295
          %405 = vst.msk [vmem:[#allocation5 + $0x78] sm:$0xff] %vm341, 4294967295
        $region77: #{tpu_custom_call.1} parent=68 // pred_fallthru
          _
        %v406 = vld [vmem:[%s332] sm:$0xf]
        %v407 = vld [vmem:[%s332 + $0x4] sm:$0xf]
        %v408 = vld [vmem:[%s332 + $0x8] sm:$0xf]
        %v409 = vld [vmem:[%s332 + $0xc] sm:$0xf]
        %v410 = vld [vmem:[%s332 + $0x10] sm:$0xf]
        %v411 = vld [vmem:[%s332 + $0x14] sm:$0xf]
        %v412 = vld [vmem:[%s332 + $0x18] sm:$0xf]
        %v413 = vld [vmem:[%s332 + $0x1c] sm:$0xf]
        %v414 = vld [vmem:[%s332 + $0x20] sm:$0xf]
        %v415 = vld [vmem:[%s332 + $0x24] sm:$0xf]
        %v416 = vld [vmem:[%s332 + $0x28] sm:$0xf]
        %v417 = vld [vmem:[%s332 + $0x2c] sm:$0xf]
        %v418 = vld [vmem:[%s332 + $0x30] sm:$0xf]
        %v419 = vld [vmem:[%s332 + $0x34] sm:$0xf]
        %v420 = vld [vmem:[%s332 + $0x38] sm:$0xf]
        %v421 = vld [vmem:[%s332 + $0x3c] sm:$0xf]
        %v422 = vld [vmem:[%s284] sm:$0xf]
        %v423 = vld [vmem:[%s284 + $0x4] sm:$0xf]
        %v424 = vld [vmem:[%s284 + $0x8] sm:$0xf]
        %v425 = vld [vmem:[%s284 + $0xc] sm:$0xf]
        %v426 = vld [vmem:[%s284 + $0x10] sm:$0xf]
        %v427 = vld [vmem:[%s284 + $0x14] sm:$0xf]
        %v428 = vld [vmem:[%s284 + $0x18] sm:$0xf]
        %v429 = vld [vmem:[%s284 + $0x1c] sm:$0xf]
        %v446 = vunpack.c.l.b16 %v406
        %v447 = vunpack.c.l.b16 %v407
        %v448 = vunpack.c.l.b16 %v408
        %v449 = vunpack.c.l.b16 %v409
        %v450 = vunpack.c.l.b16 %v410
        %v451 = vunpack.c.l.b16 %v411
        %v452 = vunpack.c.l.b16 %v412
        %v453 = vunpack.c.l.b16 %v413
        %v454 = vunpack.c.l.b16 %v414
        %v455 = vunpack.c.l.b16 %v415
        %v456 = vunpack.c.l.b16 %v416
        %v457 = vunpack.c.l.b16 %v417
        %v458 = vunpack.c.l.b16 %v418
        %v459 = vunpack.c.l.b16 %v419
        %v460 = vunpack.c.l.b16 %v420
        %v461 = vunpack.c.l.b16 %v421
        %v462 = vpack.c.b16 %v447, %v446
        %v463 = vpack.c.b16 %v449, %v448
        %v464 = vpack.c.b16 %v451, %v450
        %v465 = vpack.c.b16 %v453, %v452
        %v466 = vpack.c.b16 %v455, %v454
        %v467 = vpack.c.b16 %v457, %v456
        %v468 = vpack.c.b16 %v459, %v458
        %v469 = vpack.c.b16 %v461, %v460
        %v478 = vunpack.c.l.b16 %v422
        %v479 = vunpack.c.l.b16 %v423
        %v480 = vunpack.c.l.b16 %v424
        %v481 = vunpack.c.l.b16 %v425
        %v482 = vunpack.c.l.b16 %v426
        %v483 = vunpack.c.l.b16 %v427
        %v484 = vunpack.c.l.b16 %v428
        %v485 = vunpack.c.l.b16 %v429
        %v486 = vpack.c.b16 %v479, %v478
        %v487 = vpack.c.b16 %v481, %v480
        %v488 = vpack.c.b16 %v483, %v482
        %v489 = vpack.c.b16 %v485, %v484
        %vm494 = vcmask 523264
        %v496 = vsel %vm494, %v462, 0
        %v499 = vsel %vm494, %v463, 0
        %v502 = vsel %vm494, %v464, 0
        %v505 = vsel %vm494, %v465, 0
        %v508 = vsel %vm494, %v466, 0
        %v511 = vsel %vm494, %v467, 0
        %v514 = vsel %vm494, %v468, 0
        %v517 = vsel %vm494, %v469, 0
        %519 = vmatprep.subr.bf16.mxu0 0
        %520 = vmatpush1.bf16.msra.mxu0 0
        %521 = vmatprep.subr.bf16.mxu0 0
        %522 = vmatpush1.bf16.msra.mxu0 0
        %523 = vmatprep.subr.bf16.mxu0 0
        %524 = vmatpush1.bf16.msra.mxu0 0
        %525 = vmatprep.subr.bf16.mxu0 0
        %526 = vmatpush1.bf16.msra.mxu0 0
        %527 = vmatprep.subr.bf16.mxu0 0
        %528 = vmatpush1.bf16.msra.mxu0 %v489
        %529 = vmatprep.subr.bf16.mxu0 0
        %530 = vmatpush1.bf16.msra.mxu0 %v488
        %531 = vmatprep.subr.bf16.mxu0 0
        %532 = vmatpush1.bf16.msra.mxu0 %v487
        %533 = vmatprep.subr.bf16.mxu0 0
        %534 = vmatpush1.bf16.msra.mxu0 %v486
        %535 = vmatprep.subr.bf16.mxu0 0
        %536 = vmatpush2.bf16.msra.mxu0 0
        %537 = vmatprep.subr.bf16.mxu0 0
        %538 = vmatpush2.bf16.msra.mxu0 0
        %539 = vmatprep.subr.bf16.mxu0 0
        %540 = vmatpush2.bf16.msra.mxu0 0
        %541 = vmatprep.subr.bf16.mxu0 0
        %542 = vmatpush2.bf16.msra.mxu0 0
        %543 = vmatprep.subr.bf16.mxu0 0
        %544 = vmatpush2.bf16.msra.mxu0 0
        %545 = vmatprep.subr.bf16.mxu0 0
        %546 = vmatpush2.bf16.msra.mxu0 0
        %547 = vmatprep.subr.bf16.mxu0 0
        %548 = vmatpush2.bf16.msra.mxu0 0
        %549 = vmatprep.subr.bf16.mxu0 0
        %550 = vmatpush2.bf16.msra.mxu0 0
        %551 = vmatprep.mubr.bf16.mxu0 0
        %552 = vmatmul.mubr.bf16.gmra.mxu0 %v496
        %v553 = vpop.f32.mrf.mxu0
        %v554 = vadd.f32 0.0, %v553
        %v555 = vpop.f32.mrf.mxu0
        %v556 = vpop.f32.mrf.mxu0
        %v557 = vadd.f32 0.0, %v556
        %v558 = vpop.f32.mrf.mxu0
        %559 = vmatprep.mubr.bf16.mxu0 0
        %560 = vmatmul.mubr.bf16.gmra.mxu0 %v499
        %v561 = vpop.f32.mrf.mxu0
        %v562 = vadd.f32 0.0, %v561
        %v563 = vpop.f32.mrf.mxu0
        %v564 = vpop.f32.mrf.mxu0
        %v565 = vadd.f32 0.0, %v564
        %v566 = vpop.f32.mrf.mxu0
        %567 = vmatprep.mubr.bf16.mxu0 0
        %568 = vmatmul.mubr.bf16.gmra.mxu0 %v502
        %v569 = vpop.f32.mrf.mxu0
        %v570 = vadd.f32 0.0, %v569
        %v571 = vpop.f32.mrf.mxu0
        %v572 = vpop.f32.mrf.mxu0
        %v573 = vadd.f32 0.0, %v572
        %v574 = vpop.f32.mrf.mxu0
        %575 = vmatprep.mubr.bf16.mxu0 0
        %576 = vmatmul.mubr.bf16.gmra.mxu0 %v505
        %v577 = vpop.f32.mrf.mxu0
        %v578 = vadd.f32 0.0, %v577
        %v579 = vpop.f32.mrf.mxu0
        %v580 = vpop.f32.mrf.mxu0
        %v581 = vadd.f32 0.0, %v580
        %v582 = vpop.f32.mrf.mxu0
        %583 = vmatprep.mubr.bf16.mxu0 0
        %584 = vmatmul.mubr.bf16.gmra.mxu0 %v508
        %v585 = vpop.f32.mrf.mxu0
        %v586 = vadd.f32 0.0, %v585
        %v587 = vpop.f32.mrf.mxu0
        %v588 = vpop.f32.mrf.mxu0
        %v589 = vadd.f32 0.0, %v588
        %v590 = vpop.f32.mrf.mxu0
        %591 = vmatprep.mubr.bf16.mxu0 0
        %592 = vmatmul.mubr.bf16.gmra.mxu0 %v511
        %v593 = vpop.f32.mrf.mxu0
        %v594 = vadd.f32 0.0, %v593
        %v595 = vpop.f32.mrf.mxu0
        %v596 = vpop.f32.mrf.mxu0
        %v597 = vadd.f32 0.0, %v596
        %v598 = vpop.f32.mrf.mxu0
        %599 = vmatprep.mubr.bf16.mxu0 0
        %600 = vmatmul.mubr.bf16.gmra.mxu0 %v514
        %v601 = vpop.f32.mrf.mxu0
        %v602 = vadd.f32 0.0, %v601
        %v603 = vpop.f32.mrf.mxu0
        %v604 = vpop.f32.mrf.mxu0
        %v605 = vadd.f32 0.0, %v604
        %v606 = vpop.f32.mrf.mxu0
        %607 = vmatprep.mubr.bf16.mxu0 0
        %608 = vmatmul.mubr.bf16.gmra.mxu0 %v517
        %v609 = vpop.f32.mrf.mxu0
        %v610 = vadd.f32 0.0, %v609
        %v611 = vpop.f32.mrf.mxu0
        %v612 = vpop.f32.mrf.mxu0
        %v613 = vadd.f32 0.0, %v612
        %v614 = vpop.f32.mrf.mxu0
        %615 = vdwg.mxu0
        %v616 = vld [vmem:[%s326] sm:$0xff]
        %v617 = vld [vmem:[%s326 + $0x8] sm:$0xff]
        %v618 = vld [vmem:[%s326 + $0x10] sm:$0xff]
        %v619 = vld [vmem:[%s326 + $0x18] sm:$0xff]
        %v620 = vld [vmem:[%s326 + $0x20] sm:$0xff]
        %v621 = vld [vmem:[%s326 + $0x28] sm:$0xff]
        %v622 = vld [vmem:[%s326 + $0x30] sm:$0xff]
        %v623 = vld [vmem:[%s326 + $0x38] sm:$0xff]
        %v624 = vld [vmem:[%s326 + $0x40] sm:$0xff]
        %v625 = vld [vmem:[%s326 + $0x48] sm:$0xff]
        %v626 = vld [vmem:[%s326 + $0x50] sm:$0xff]
        %v627 = vld [vmem:[%s326 + $0x58] sm:$0xff]
        %v628 = vld [vmem:[%s326 + $0x60] sm:$0xff]
        %v629 = vld [vmem:[%s326 + $0x68] sm:$0xff]
        %v630 = vld [vmem:[%s326 + $0x70] sm:$0xff]
        %v631 = vld [vmem:[%s326 + $0x78] sm:$0xff]
        %v632 = vlaneseq
        %v633 = vand.u32 %v632, 127
        %s634 = smul.u32 %s27, 128
        %v635 = vstv %s634
        %v636 = vadd.s32 %v633, %v635
        %637 = vset.pattern.permute.xlu0 0
        %638 = vperm.xlu0 %637, %v616
        %v639 = vpop.permute.xlu0 %638
        %640 = vset.pattern.permute.xlu0 0
        %641 = vperm.xlu0 %640, %v617
        %v642 = vpop.permute.xlu0 %641
        %643 = vset.pattern.permute.xlu0 0
        %644 = vperm.xlu0 %643, %v618
        %v645 = vpop.permute.xlu0 %644
        %646 = vset.pattern.permute.xlu0 0
        %647 = vperm.xlu0 %646, %v619
        %v648 = vpop.permute.xlu0 %647
        %649 = vset.pattern.permute.xlu0 0
        %650 = vperm.xlu0 %649, %v620
        %v651 = vpop.permute.xlu0 %650
        %652 = vset.pattern.permute.xlu0 0
        %653 = vperm.xlu0 %652, %v621
        %v654 = vpop.permute.xlu0 %653
        %655 = vset.pattern.permute.xlu0 0
        %656 = vperm.xlu0 %655, %v622
        %v657 = vpop.permute.xlu0 %656
        %658 = vset.pattern.permute.xlu0 0
        %659 = vperm.xlu0 %658, %v623
        %v660 = vpop.permute.xlu0 %659
        %661 = vset.pattern.permute.xlu0 0
        %662 = vperm.xlu0 %661, %v624
        %v663 = vpop.permute.xlu0 %662
        %664 = vset.pattern.permute.xlu0 0
        %665 = vperm.xlu0 %664, %v625
        %v666 = vpop.permute.xlu0 %665
        %667 = vset.pattern.permute.xlu0 0
        %668 = vperm.xlu0 %667, %v626
        %v669 = vpop.permute.xlu0 %668
        %670 = vset.pattern.permute.xlu0 0
        %671 = vperm.xlu0 %670, %v627
        %v672 = vpop.permute.xlu0 %671
        %673 = vset.pattern.permute.xlu0 0
        %674 = vperm.xlu0 %673, %v628
        %v675 = vpop.permute.xlu0 %674
        %676 = vset.pattern.permute.xlu0 0
        %677 = vperm.xlu0 %676, %v629
        %v678 = vpop.permute.xlu0 %677
        %679 = vset.pattern.permute.xlu0 0
        %680 = vperm.xlu0 %679, %v630
        %v681 = vpop.permute.xlu0 %680
        %682 = vset.pattern.permute.xlu0 0
        %683 = vperm.xlu0 %682, %v631
        %v684 = vpop.permute.xlu0 %683
        %vm685 = vcmp.eq.s32.totalorder %v636, %v639
        %vm686 = vcmp.eq.s32.totalorder %v636, %v642
        %vm687 = vcmp.eq.s32.totalorder %v636, %v645
        %vm688 = vcmp.eq.s32.totalorder %v636, %v648
        %vm689 = vcmp.eq.s32.totalorder %v636, %v651
        %vm690 = vcmp.eq.s32.totalorder %v636, %v654
        %vm691 = vcmp.eq.s32.totalorder %v636, %v657
        %vm692 = vcmp.eq.s32.totalorder %v636, %v660
        %vm693 = vcmp.eq.s32.totalorder %v636, %v663
        %vm694 = vcmp.eq.s32.totalorder %v636, %v666
        %vm695 = vcmp.eq.s32.totalorder %v636, %v669
        %vm696 = vcmp.eq.s32.totalorder %v636, %v672
        %vm697 = vcmp.eq.s32.totalorder %v636, %v675
        %vm698 = vcmp.eq.s32.totalorder %v636, %v678
        %vm699 = vcmp.eq.s32.totalorder %v636, %v681
        %vm700 = vcmp.eq.s32.totalorder %v636, %v684
        %v701 = vmul.f32 %v554, 15.0
        %v702 = vmul.f32 %v557, 15.0
        %v703 = vmul.f32 %v562, 15.0
        %v704 = vmul.f32 %v565, 15.0
        %v705 = vmul.f32 %v570, 15.0
        %v706 = vmul.f32 %v573, 15.0
        %v707 = vmul.f32 %v578, 15.0
        %v708 = vmul.f32 %v581, 15.0
        %v709 = vmul.f32 %v586, 15.0
        %v710 = vmul.f32 %v589, 15.0
        %v711 = vmul.f32 %v594, 15.0
        %v712 = vmul.f32 %v597, 15.0
        %v713 = vmul.f32 %v602, 15.0
        %v714 = vmul.f32 %v605, 15.0
        %v715 = vmul.f32 %v610, 15.0
        %v716 = vmul.f32 %v613, 15.0
        %v717 = vsub.f32 %v701, 4.5
        %v718 = vsub.f32 %v702, 4.5
        %v719 = vsub.f32 %v703, 4.5
        %v720 = vsub.f32 %v704, 4.5
        %v721 = vsub.f32 %v705, 4.5
        %v722 = vsub.f32 %v706, 4.5
        %v723 = vsub.f32 %v707, 4.5
        %v724 = vsub.f32 %v708, 4.5
        %v725 = vsub.f32 %v709, 4.5
        %v726 = vsub.f32 %v710, 4.5
        %v727 = vsub.f32 %v711, 4.5
        %v728 = vsub.f32 %v712, 4.5
        %v729 = vsub.f32 %v713, 4.5
        %v730 = vsub.f32 %v714, 4.5
        %v731 = vsub.f32 %v715, 4.5
        %v732 = vsub.f32 %v716, 4.5
        %v733 = vsel %vm685, %v717, %v701
        %v734 = vsel %vm686, %v718, %v702
        %v735 = vsel %vm687, %v719, %v703
        %v736 = vsel %vm688, %v720, %v704
        %v737 = vsel %vm689, %v721, %v705
        %v738 = vsel %vm690, %v722, %v706
        %v739 = vsel %vm691, %v723, %v707
        %v740 = vsel %vm692, %v724, %v708
        %v741 = vsel %vm693, %v725, %v709
        %v742 = vsel %vm694, %v726, %v710
        %v743 = vsel %vm695, %v727, %v711
        %v744 = vsel %vm696, %v728, %v712
        %v745 = vsel %vm697, %v729, %v713
        %v746 = vsel %vm698, %v730, %v714
        %v747 = vsel %vm699, %v731, %v715
        %v748 = vsel %vm700, %v732, %v716
        %749 = vmax.xlane.f32.xlu0 %v733
        %v750 = vpop.xlane.xlu0 %749
        %751 = vmax.xlane.f32.xlu0 %v734
        %v752 = vpop.xlane.xlu0 %751
        %753 = vmax.xlane.f32.xlu0 %v735
        %v754 = vpop.xlane.xlu0 %753
        %755 = vmax.xlane.f32.xlu0 %v736
        %v756 = vpop.xlane.xlu0 %755
        %757 = vmax.xlane.f32.xlu0 %v737
        %v758 = vpop.xlane.xlu0 %757
        %759 = vmax.xlane.f32.xlu0 %v738
        %v760 = vpop.xlane.xlu0 %759
        %761 = vmax.xlane.f32.xlu0 %v739
        %v762 = vpop.xlane.xlu0 %761
        %763 = vmax.xlane.f32.xlu0 %v740
        %v764 = vpop.xlane.xlu0 %763
        %765 = vmax.xlane.f32.xlu0 %v741
        %v766 = vpop.xlane.xlu0 %765
        %767 = vmax.xlane.f32.xlu0 %v742
        %v768 = vpop.xlane.xlu0 %767
        %769 = vmax.xlane.f32.xlu0 %v743
        %v770 = vpop.xlane.xlu0 %769
        %771 = vmax.xlane.f32.xlu0 %v744
        %v772 = vpop.xlane.xlu0 %771
        %773 = vmax.xlane.f32.xlu0 %v745
        %v774 = vpop.xlane.xlu0 %773
        %775 = vmax.xlane.f32.xlu0 %v746
        %v776 = vpop.xlane.xlu0 %775
        %777 = vmax.xlane.f32.xlu0 %v747
        %v778 = vpop.xlane.xlu0 %777
        %779 = vmax.xlane.f32.xlu0 %v748
        %v780 = vpop.xlane.xlu0 %779
        %v781 = vld [vmem:[#allocation2] sm:$0xff]
        %v782 = vld [vmem:[#allocation2 + $0x8] sm:$0xff]
        %v783 = vld [vmem:[#allocation2 + $0x10] sm:$0xff]
        %v784 = vld [vmem:[#allocation2 + $0x18] sm:$0xff]
        %v785 = vld [vmem:[#allocation2 + $0x20] sm:$0xff]
        %v786 = vld [vmem:[#allocation2 + $0x28] sm:$0xff]
        %v787 = vld [vmem:[#allocation2 + $0x30] sm:$0xff]
        %v788 = vld [vmem:[#allocation2 + $0x38] sm:$0xff]
        %v789 = vld [vmem:[#allocation2 + $0x40] sm:$0xff]
        %v790 = vld [vmem:[#allocation2 + $0x48] sm:$0xff]
        %v791 = vld [vmem:[#allocation2 + $0x50] sm:$0xff]
        %v792 = vld [vmem:[#allocation2 + $0x58] sm:$0xff]
        %v793 = vld [vmem:[#allocation2 + $0x60] sm:$0xff]
        %v794 = vld [vmem:[#allocation2 + $0x68] sm:$0xff]
        %v795 = vld [vmem:[#allocation2 + $0x70] sm:$0xff]
        %v796 = vld [vmem:[#allocation2 + $0x78] sm:$0xff]
        %v797 = vmax.f32 %v781, %v750
        %v798 = vmax.f32 %v782, %v752
        %v799 = vmax.f32 %v783, %v754
        %v800 = vmax.f32 %v784, %v756
        %v801 = vmax.f32 %v785, %v758
        %v802 = vmax.f32 %v786, %v760
        %v803 = vmax.f32 %v787, %v762
        %v804 = vmax.f32 %v788, %v764
        %v805 = vmax.f32 %v789, %v766
        %v806 = vmax.f32 %v790, %v768
        %v807 = vmax.f32 %v791, %v770
        %v808 = vmax.f32 %v792, %v772
        %v809 = vmax.f32 %v793, %v774
        %v810 = vmax.f32 %v794, %v776
        %v811 = vmax.f32 %v795, %v778
        %v812 = vmax.f32 %v796, %v780
        %v813 = vld [vmem:[#allocation3] sm:$0xff]
        %v814 = vld [vmem:[#allocation3 + $0x8] sm:$0xff]
        %v815 = vld [vmem:[#allocation3 + $0x10] sm:$0xff]
        %v816 = vld [vmem:[#allocation3 + $0x18] sm:$0xff]
        %v817 = vld [vmem:[#allocation3 + $0x20] sm:$0xff]
        %v818 = vld [vmem:[#allocation3 + $0x28] sm:$0xff]
        %v819 = vld [vmem:[#allocation3 + $0x30] sm:$0xff]
        %v820 = vld [vmem:[#allocation3 + $0x38] sm:$0xff]
        %v821 = vld [vmem:[#allocation3 + $0x40] sm:$0xff]
        %v822 = vld [vmem:[#allocation3 + $0x48] sm:$0xff]
        %v823 = vld [vmem:[#allocation3 + $0x50] sm:$0xff]
        %v824 = vld [vmem:[#allocation3 + $0x58] sm:$0xff]
        %v825 = vld [vmem:[#allocation3 + $0x60] sm:$0xff]
        %v826 = vld [vmem:[#allocation3 + $0x68] sm:$0xff]
        %v827 = vld [vmem:[#allocation3 + $0x70] sm:$0xff]
        %v828 = vld [vmem:[#allocation3 + $0x78] sm:$0xff]
        %v829 = vsub.f32 %v781, %v797
        %v830 = vsub.f32 %v782, %v798
        %v831 = vsub.f32 %v783, %v799
        %v832 = vsub.f32 %v784, %v800
        %v833 = vsub.f32 %v785, %v801
        %v834 = vsub.f32 %v786, %v802
        %v835 = vsub.f32 %v787, %v803
        %v836 = vsub.f32 %v788, %v804
        %v837 = vsub.f32 %v789, %v805
        %v838 = vsub.f32 %v790, %v806
        %v839 = vsub.f32 %v791, %v807
        %v840 = vsub.f32 %v792, %v808
        %v841 = vsub.f32 %v793, %v809
        %v842 = vsub.f32 %v794, %v810
        %v843 = vsub.f32 %v795, %v811
        %v844 = vsub.f32 %v796, %v812
        %v845 = vmul.f32 %v829, 1.442695
        %v846 = vpow.pop %v845
        %v847 = vmul.f32 %v830, 1.442695
        %v848 = vpow.pop %v847
        %v849 = vmul.f32 %v831, 1.442695
        %v850 = vpow.pop %v849
        %v851 = vmul.f32 %v832, 1.442695
        %v852 = vpow.pop %v851
        %v853 = vmul.f32 %v833, 1.442695
        %v854 = vpow.pop %v853
        %v855 = vmul.f32 %v834, 1.442695
        %v856 = vpow.pop %v855
        %v857 = vmul.f32 %v835, 1.442695
        %v858 = vpow.pop %v857
        %v859 = vmul.f32 %v836, 1.442695
        %v860 = vpow.pop %v859
        %v861 = vmul.f32 %v837, 1.442695
        %v862 = vpow.pop %v861
        %v863 = vmul.f32 %v838, 1.442695
        %v864 = vpow.pop %v863
        %v865 = vmul.f32 %v839, 1.442695
        %v866 = vpow.pop %v865
        %v867 = vmul.f32 %v840, 1.442695
        %v868 = vpow.pop %v867
        %v869 = vmul.f32 %v841, 1.442695
        %v870 = vpow.pop %v869
        %v871 = vmul.f32 %v842, 1.442695
        %v872 = vpow.pop %v871
        %v873 = vmul.f32 %v843, 1.442695
        %v874 = vpow.pop %v873
        %v875 = vmul.f32 %v844, 1.442695
        %v876 = vpow.pop %v875
        %v877 = vmul.f32 %v813, %v846
        %v878 = vmul.f32 %v814, %v848
        %v879 = vmul.f32 %v815, %v850
        %v880 = vmul.f32 %v816, %v852
        %v881 = vmul.f32 %v817, %v854
        %v882 = vmul.f32 %v818, %v856
        %v883 = vmul.f32 %v819, %v858
        %v884 = vmul.f32 %v820, %v860
        %v885 = vmul.f32 %v821, %v862
        %v886 = vmul.f32 %v822, %v864
        %v887 = vmul.f32 %v823, %v866
        %v888 = vmul.f32 %v824, %v868
        %v889 = vmul.f32 %v825, %v870
        %v890 = vmul.f32 %v826, %v872
        %v891 = vmul.f32 %v827, %v874
        %v892 = vmul.f32 %v828, %v876
        %894 = vset.pattern.permute.xlu0 0
        %895 = vperm.xlu0 %894, %v797
        %v896 = vpop.permute.xlu0 %895
        %899 = vset.pattern.permute.xlu0 0
        %900 = vperm.xlu0 %899, %v798
        %v901 = vpop.permute.xlu0 %900
        %904 = vset.pattern.permute.xlu0 0
        %905 = vperm.xlu0 %904, %v799
        %v906 = vpop.permute.xlu0 %905
        %909 = vset.pattern.permute.xlu0 0
        %910 = vperm.xlu0 %909, %v800
        %v911 = vpop.permute.xlu0 %910
        %914 = vset.pattern.permute.xlu0 0
        %915 = vperm.xlu0 %914, %v801
        %v916 = vpop.permute.xlu0 %915
        %919 = vset.pattern.permute.xlu0 0
        %920 = vperm.xlu0 %919, %v802
        %v921 = vpop.permute.xlu0 %920
        %924 = vset.pattern.permute.xlu0 0
        %925 = vperm.xlu0 %924, %v803
        %v926 = vpop.permute.xlu0 %925
        %929 = vset.pattern.permute.xlu0 0
        %930 = vperm.xlu0 %929, %v804
        %v931 = vpop.permute.xlu0 %930
        %934 = vset.pattern.permute.xlu0 0
        %935 = vperm.xlu0 %934, %v805
        %v936 = vpop.permute.xlu0 %935
        %939 = vset.pattern.permute.xlu0 0
        %940 = vperm.xlu0 %939, %v806
        %v941 = vpop.permute.xlu0 %940
        %944 = vset.pattern.permute.xlu0 0
        %945 = vperm.xlu0 %944, %v807
        %v946 = vpop.permute.xlu0 %945
        %949 = vset.pattern.permute.xlu0 0
        %950 = vperm.xlu0 %949, %v808
        %v951 = vpop.permute.xlu0 %950
        %954 = vset.pattern.permute.xlu0 0
        %955 = vperm.xlu0 %954, %v809
        %v956 = vpop.permute.xlu0 %955
        %959 = vset.pattern.permute.xlu0 0
        %960 = vperm.xlu0 %959, %v810
        %v961 = vpop.permute.xlu0 %960
        %964 = vset.pattern.permute.xlu0 0
        %965 = vperm.xlu0 %964, %v811
        %v966 = vpop.permute.xlu0 %965
        %969 = vset.pattern.permute.xlu0 0
        %970 = vperm.xlu0 %969, %v812
        %v971 = vpop.permute.xlu0 %970
        %v973 = vsub.f32 %v733, %v896
        %v974 = vsub.f32 %v734, %v901
        %v975 = vsub.f32 %v735, %v906
        %v976 = vsub.f32 %v736, %v911
        %v977 = vsub.f32 %v737, %v916
        %v978 = vsub.f32 %v738, %v921
        %v979 = vsub.f32 %v739, %v926
        %v980 = vsub.f32 %v740, %v931
        %v981 = vsub.f32 %v741, %v936
        %v982 = vsub.f32 %v742, %v941
        %v983 = vsub.f32 %v743, %v946
        %v984 = vsub.f32 %v744, %v951
        %v985 = vsub.f32 %v745, %v956
        %v986 = vsub.f32 %v746, %v961
        %v987 = vsub.f32 %v747, %v966
        %v988 = vsub.f32 %v748, %v971
        %v989 = vmul.f32 %v973, 1.442695
        %v990 = vpow.pop %v989
        %v991 = vmul.f32 %v974, 1.442695
        %v992 = vpow.pop %v991
        %v993 = vmul.f32 %v975, 1.442695
        %v994 = vpow.pop %v993
        %v995 = vmul.f32 %v976, 1.442695
        %v996 = vpow.pop %v995
        %v997 = vmul.f32 %v977, 1.442695
        %v998 = vpow.pop %v997
        %v999 = vmul.f32 %v978, 1.442695
        %v1000 = vpow.pop %v999
        %v1001 = vmul.f32 %v979, 1.442695
        %v1002 = vpow.pop %v1001
        %v1003 = vmul.f32 %v980, 1.442695
        %v1004 = vpow.pop %v1003
        %v1005 = vmul.f32 %v981, 1.442695
        %v1006 = vpow.pop %v1005
        %v1007 = vmul.f32 %v982, 1.442695
        %v1008 = vpow.pop %v1007
        %v1009 = vmul.f32 %v983, 1.442695
        %v1010 = vpow.pop %v1009
        %v1011 = vmul.f32 %v984, 1.442695
        %v1012 = vpow.pop %v1011
        %v1013 = vmul.f32 %v985, 1.442695
        %v1014 = vpow.pop %v1013
        %v1015 = vmul.f32 %v986, 1.442695
        %v1016 = vpow.pop %v1015
        %v1017 = vmul.f32 %v987, 1.442695
        %v1018 = vpow.pop %v1017
        %v1019 = vmul.f32 %v988, 1.442695
        %v1020 = vpow.pop %v1019
        %1021 = vadd.xlane.f32.xlu0 %v990
        %v1022 = vpop.xlane.xlu0 %1021
        %1023 = vadd.xlane.f32.xlu0 %v992
        %v1024 = vpop.xlane.xlu0 %1023
        %1025 = vadd.xlane.f32.xlu0 %v994
        %v1026 = vpop.xlane.xlu0 %1025
        %1027 = vadd.xlane.f32.xlu0 %v996
        %v1028 = vpop.xlane.xlu0 %1027
        %1029 = vadd.xlane.f32.xlu0 %v998
        %v1030 = vpop.xlane.xlu0 %1029
        %1031 = vadd.xlane.f32.xlu0 %v1000
        %v1032 = vpop.xlane.xlu0 %1031
        %1033 = vadd.xlane.f32.xlu0 %v1002
        %v1034 = vpop.xlane.xlu0 %1033
        %1035 = vadd.xlane.f32.xlu0 %v1004
        %v1036 = vpop.xlane.xlu0 %1035
        %1037 = vadd.xlane.f32.xlu0 %v1006
        %v1038 = vpop.xlane.xlu0 %1037
        %1039 = vadd.xlane.f32.xlu0 %v1008
        %v1040 = vpop.xlane.xlu0 %1039
        %1041 = vadd.xlane.f32.xlu0 %v1010
        %v1042 = vpop.xlane.xlu0 %1041
        %1043 = vadd.xlane.f32.xlu0 %v1012
        %v1044 = vpop.xlane.xlu0 %1043
        %1045 = vadd.xlane.f32.xlu0 %v1014
        %v1046 = vpop.xlane.xlu0 %1045
        %1047 = vadd.xlane.f32.xlu0 %v1016
        %v1048 = vpop.xlane.xlu0 %1047
        %1049 = vadd.xlane.f32.xlu0 %v1018
        %v1050 = vpop.xlane.xlu0 %1049
        %1051 = vadd.xlane.f32.xlu0 %v1020
        %v1052 = vpop.xlane.xlu0 %1051
        %v1053 = vadd.f32 %v877, %v1022
        %v1054 = vadd.f32 %v878, %v1024
        %v1055 = vadd.f32 %v879, %v1026
        %v1056 = vadd.f32 %v880, %v1028
        %v1057 = vadd.f32 %v881, %v1030
        %v1058 = vadd.f32 %v882, %v1032
        %v1059 = vadd.f32 %v883, %v1034
        %v1060 = vadd.f32 %v884, %v1036
        %v1061 = vadd.f32 %v885, %v1038
        %v1062 = vadd.f32 %v886, %v1040
        %v1063 = vadd.f32 %v887, %v1042
        %v1064 = vadd.f32 %v888, %v1044
        %v1065 = vadd.f32 %v889, %v1046
        %v1066 = vadd.f32 %v890, %v1048
        %v1067 = vadd.f32 %v891, %v1050
        %v1068 = vadd.f32 %v892, %v1052
        %vm1069 = vcmask 7168
        %1070 = vst.msk [vmem:[#allocation3] sm:$0xff] %vm1069, %v1053
        %1071 = vst.msk [vmem:[#allocation3 + $0x8] sm:$0xff] %vm1069, %v1054
        %1072 = vst.msk [vmem:[#allocation3 + $0x10] sm:$0xff] %vm1069, %v1055
        %1073 = vst.msk [vmem:[#allocation3 + $0x18] sm:$0xff] %vm1069, %v1056
        %1074 = vst.msk [vmem:[#allocation3 + $0x20] sm:$0xff] %vm1069, %v1057
        %1075 = vst.msk [vmem:[#allocation3 + $0x28] sm:$0xff] %vm1069, %v1058
        %1076 = vst.msk [vmem:[#allocation3 + $0x30] sm:$0xff] %vm1069, %v1059
        %1077 = vst.msk [vmem:[#allocation3 + $0x38] sm:$0xff] %vm1069, %v1060
        %1078 = vst.msk [vmem:[#allocation3 + $0x40] sm:$0xff] %vm1069, %v1061
        %1079 = vst.msk [vmem:[#allocation3 + $0x48] sm:$0xff] %vm1069, %v1062
        %1080 = vst.msk [vmem:[#allocation3 + $0x50] sm:$0xff] %vm1069, %v1063
        %1081 = vst.msk [vmem:[#allocation3 + $0x58] sm:$0xff] %vm1069, %v1064
        %1082 = vst.msk [vmem:[#allocation3 + $0x60] sm:$0xff] %vm1069, %v1065
        %1083 = vst.msk [vmem:[#allocation3 + $0x68] sm:$0xff] %vm1069, %v1066
        %1084 = vst.msk [vmem:[#allocation3 + $0x70] sm:$0xff] %vm1069, %v1067
        %1085 = vst.msk [vmem:[#allocation3 + $0x78] sm:$0xff] %vm1069, %v1068
        %1086 = vst.msk [vmem:[#allocation2] sm:$0xff] %vm1069, %v797
        %1087 = vst.msk [vmem:[#allocation2 + $0x8] sm:$0xff] %vm1069, %v798
        %1088 = vst.msk [vmem:[#allocation2 + $0x10] sm:$0xff] %vm1069, %v799
        %1089 = vst.msk [vmem:[#allocation2 + $0x18] sm:$0xff] %vm1069, %v800
        %1090 = vst.msk [vmem:[#allocation2 + $0x20] sm:$0xff] %vm1069, %v801
        %1091 = vst.msk [vmem:[#allocation2 + $0x28] sm:$0xff] %vm1069, %v802
        %1092 = vst.msk [vmem:[#allocation2 + $0x30] sm:$0xff] %vm1069, %v803
        %1093 = vst.msk [vmem:[#allocation2 + $0x38] sm:$0xff] %vm1069, %v804
        %1094 = vst.msk [vmem:[#allocation2 + $0x40] sm:$0xff] %vm1069, %v805
        %1095 = vst.msk [vmem:[#allocation2 + $0x48] sm:$0xff] %vm1069, %v806
        %1096 = vst.msk [vmem:[#allocation2 + $0x50] sm:$0xff] %vm1069, %v807
        %1097 = vst.msk [vmem:[#allocation2 + $0x58] sm:$0xff] %vm1069, %v808
        %1098 = vst.msk [vmem:[#allocation2 + $0x60] sm:$0xff] %vm1069, %v809
        %1099 = vst.msk [vmem:[#allocation2 + $0x68] sm:$0xff] %vm1069, %v810
        %1100 = vst.msk [vmem:[#allocation2 + $0x70] sm:$0xff] %vm1069, %v811
        %1101 = vst.msk [vmem:[#allocation2 + $0x78] sm:$0xff] %vm1069, %v812
        %vm1102 = vcmp.eq.f32.partialorder %v733, %v750
        %vm1103 = vcmp.eq.f32.partialorder %v734, %v752
        %vm1104 = vcmp.eq.f32.partialorder %v735, %v754
        %vm1105 = vcmp.eq.f32.partialorder %v736, %v756
        %vm1106 = vcmp.eq.f32.partialorder %v737, %v758
        %vm1107 = vcmp.eq.f32.partialorder %v738, %v760
        %vm1108 = vcmp.eq.f32.partialorder %v739, %v762
        %vm1109 = vcmp.eq.f32.partialorder %v740, %v764
        %vm1110 = vcmp.eq.f32.partialorder %v741, %v766
        %vm1111 = vcmp.eq.f32.partialorder %v742, %v768
        %vm1112 = vcmp.eq.f32.partialorder %v743, %v770
        %vm1113 = vcmp.eq.f32.partialorder %v744, %v772
        %vm1114 = vcmp.eq.f32.partialorder %v745, %v774
        %vm1115 = vcmp.eq.f32.partialorder %v746, %v776
        %vm1116 = vcmp.eq.f32.partialorder %v747, %v778
        %vm1117 = vcmp.eq.f32.partialorder %v748, %v780
        %v1118 = vsel %vm1102, %v636, 1073741824
        %v1119 = vsel %vm1103, %v636, 1073741824
        %v1120 = vsel %vm1104, %v636, 1073741824
        %v1121 = vsel %vm1105, %v636, 1073741824
        %v1122 = vsel %vm1106, %v636, 1073741824
        %v1123 = vsel %vm1107, %v636, 1073741824
        %v1124 = vsel %vm1108, %v636, 1073741824
        %v1125 = vsel %vm1109, %v636, 1073741824
        %v1126 = vsel %vm1110, %v636, 1073741824
        %v1127 = vsel %vm1111, %v636, 1073741824
        %v1128 = vsel %vm1112, %v636, 1073741824
        %v1129 = vsel %vm1113, %v636, 1073741824
        %v1130 = vsel %vm1114, %v636, 1073741824
        %v1131 = vsel %vm1115, %v636, 1073741824
        %v1132 = vsel %vm1116, %v636, 1073741824
        %v1133 = vsel %vm1117, %v636, 1073741824
        %v1134 = vand.u32 %v1118, 65535
        %v1135 = vshra.s32 %v1118, 16
        %v1136 = vcvt.s32.f32 %v1134
        %v1137 = vcvt.s32.f32 %v1135
        %1138 = vmin.xlane.f32.xlu0 %v1137
        %v1139 = vpop.xlane.xlu0 %1138
        %vm1140 = vcmp.eq.f32.partialorder %v1137, %v1139
        %v1141 = vsel %vm1140, %v1136, inf
        %1142 = vmin.xlane.f32.xlu0 %v1141
        %v1143 = vpop.xlane.xlu0 %1142
        %v1144 = vcvt.f32.s32 %v1143
        %v1145 = vcvt.f32.s32 %v1139
        %v1146 = vshll.u32 %v1145, 16
        %v1147 = vadd.s32 %v1146, %v1144
        %v1148 = vand.u32 %v1119, 65535
        %v1149 = vshra.s32 %v1119, 16
        %v1150 = vcvt.s32.f32 %v1148
        %v1151 = vcvt.s32.f32 %v1149
        %1152 = vmin.xlane.f32.xlu0 %v1151
        %v1153 = vpop.xlane.xlu0 %1152
        %vm1154 = vcmp.eq.f32.partialorder %v1151, %v1153
        %v1155 = vsel %vm1154, %v1150, inf
        %1156 = vmin.xlane.f32.xlu0 %v1155
        %v1157 = vpop.xlane.xlu0 %1156
        %v1158 = vcvt.f32.s32 %v1157
        %v1159 = vcvt.f32.s32 %v1153
        %v1160 = vshll.u32 %v1159, 16
        %v1161 = vadd.s32 %v1160, %v1158
        %v1162 = vand.u32 %v1120, 65535
        %v1163 = vshra.s32 %v1120, 16
        %v1164 = vcvt.s32.f32 %v1162
        %v1165 = vcvt.s32.f32 %v1163
        %1166 = vmin.xlane.f32.xlu0 %v1165
        %v1167 = vpop.xlane.xlu0 %1166
        %vm1168 = vcmp.eq.f32.partialorder %v1165, %v1167
        %v1169 = vsel %vm1168, %v1164, inf
        %1170 = vmin.xlane.f32.xlu0 %v1169
        %v1171 = vpop.xlane.xlu0 %1170
        %v1172 = vcvt.f32.s32 %v1171
        %v1173 = vcvt.f32.s32 %v1167
        %v1174 = vshll.u32 %v1173, 16
        %v1175 = vadd.s32 %v1174, %v1172
        %v1176 = vand.u32 %v1121, 65535
        %v1177 = vshra.s32 %v1121, 16
        %v1178 = vcvt.s32.f32 %v1176
        %v1179 = vcvt.s32.f32 %v1177
        %1180 = vmin.xlane.f32.xlu0 %v1179
        %v1181 = vpop.xlane.xlu0 %1180
        %vm1182 = vcmp.eq.f32.partialorder %v1179, %v1181
        %v1183 = vsel %vm1182, %v1178, inf
        %1184 = vmin.xlane.f32.xlu0 %v1183
        %v1185 = vpop.xlane.xlu0 %1184
        %v1186 = vcvt.f32.s32 %v1185
        %v1187 = vcvt.f32.s32 %v1181
        %v1188 = vshll.u32 %v1187, 16
        %v1189 = vadd.s32 %v1188, %v1186
        %v1190 = vand.u32 %v1122, 65535
        %v1191 = vshra.s32 %v1122, 16
        %v1192 = vcvt.s32.f32 %v1190
        %v1193 = vcvt.s32.f32 %v1191
        %1194 = vmin.xlane.f32.xlu0 %v1193
        %v1195 = vpop.xlane.xlu0 %1194
        %vm1196 = vcmp.eq.f32.partialorder %v1193, %v1195
        %v1197 = vsel %vm1196, %v1192, inf
        %1198 = vmin.xlane.f32.xlu0 %v1197
        %v1199 = vpop.xlane.xlu0 %1198
        %v1200 = vcvt.f32.s32 %v1199
        %v1201 = vcvt.f32.s32 %v1195
        %v1202 = vshll.u32 %v1201, 16
        %v1203 = vadd.s32 %v1202, %v1200
        %v1204 = vand.u32 %v1123, 65535
        %v1205 = vshra.s32 %v1123, 16
        %v1206 = vcvt.s32.f32 %v1204
        %v1207 = vcvt.s32.f32 %v1205
        %1208 = vmin.xlane.f32.xlu0 %v1207
        %v1209 = vpop.xlane.xlu0 %1208
        %vm1210 = vcmp.eq.f32.partialorder %v1207, %v1209
        %v1211 = vsel %vm1210, %v1206, inf
        %1212 = vmin.xlane.f32.xlu0 %v1211
        %v1213 = vpop.xlane.xlu0 %1212
        %v1214 = vcvt.f32.s32 %v1213
        %v1215 = vcvt.f32.s32 %v1209
        %v1216 = vshll.u32 %v1215, 16
        %v1217 = vadd.s32 %v1216, %v1214
        %v1218 = vand.u32 %v1124, 65535
        %v1219 = vshra.s32 %v1124, 16
        %v1220 = vcvt.s32.f32 %v1218
        %v1221 = vcvt.s32.f32 %v1219
        %1222 = vmin.xlane.f32.xlu0 %v1221
        %v1223 = vpop.xlane.xlu0 %1222
        %vm1224 = vcmp.eq.f32.partialorder %v1221, %v1223
        %v1225 = vsel %vm1224, %v1220, inf
        %1226 = vmin.xlane.f32.xlu0 %v1225
        %v1227 = vpop.xlane.xlu0 %1226
        %v1228 = vcvt.f32.s32 %v1227
        %v1229 = vcvt.f32.s32 %v1223
        %v1230 = vshll.u32 %v1229, 16
        %v1231 = vadd.s32 %v1230, %v1228
        %v1232 = vand.u32 %v1125, 65535
        %v1233 = vshra.s32 %v1125, 16
        %v1234 = vcvt.s32.f32 %v1232
        %v1235 = vcvt.s32.f32 %v1233
        %1236 = vmin.xlane.f32.xlu0 %v1235
        %v1237 = vpop.xlane.xlu0 %1236
        %vm1238 = vcmp.eq.f32.partialorder %v1235, %v1237
        %v1239 = vsel %vm1238, %v1234, inf
        %1240 = vmin.xlane.f32.xlu0 %v1239
        %v1241 = vpop.xlane.xlu0 %1240
        %v1242 = vcvt.f32.s32 %v1241
        %v1243 = vcvt.f32.s32 %v1237
        %v1244 = vshll.u32 %v1243, 16
        %v1245 = vadd.s32 %v1244, %v1242
        %v1246 = vand.u32 %v1126, 65535
        %v1247 = vshra.s32 %v1126, 16
        %v1248 = vcvt.s32.f32 %v1246
        %v1249 = vcvt.s32.f32 %v1247
        %1250 = vmin.xlane.f32.xlu0 %v1249
        %v1251 = vpop.xlane.xlu0 %1250
        %vm1252 = vcmp.eq.f32.partialorder %v1249, %v1251
        %v1253 = vsel %vm1252, %v1248, inf
        %1254 = vmin.xlane.f32.xlu0 %v1253
        %v1255 = vpop.xlane.xlu0 %1254
        %v1256 = vcvt.f32.s32 %v1255
        %v1257 = vcvt.f32.s32 %v1251
        %v1258 = vshll.u32 %v1257, 16
        %v1259 = vadd.s32 %v1258, %v1256
        %v1260 = vand.u32 %v1127, 65535
        %v1261 = vshra.s32 %v1127, 16
        %v1262 = vcvt.s32.f32 %v1260
        %v1263 = vcvt.s32.f32 %v1261
        %1264 = vmin.xlane.f32.xlu0 %v1263
        %v1265 = vpop.xlane.xlu0 %1264
        %vm1266 = vcmp.eq.f32.partialorder %v1263, %v1265
        %v1267 = vsel %vm1266, %v1262, inf
        %1268 = vmin.xlane.f32.xlu0 %v1267
        %v1269 = vpop.xlane.xlu0 %1268
        %v1270 = vcvt.f32.s32 %v1269
        %v1271 = vcvt.f32.s32 %v1265
        %v1272 = vshll.u32 %v1271, 16
        %v1273 = vadd.s32 %v1272, %v1270
        %v1274 = vand.u32 %v1128, 65535
        %v1275 = vshra.s32 %v1128, 16
        %v1276 = vcvt.s32.f32 %v1274
        %v1277 = vcvt.s32.f32 %v1275
        %1278 = vmin.xlane.f32.xlu0 %v1277
        %v1279 = vpop.xlane.xlu0 %1278
        %vm1280 = vcmp.eq.f32.partialorder %v1277, %v1279
        %v1281 = vsel %vm1280, %v1276, inf
        %1282 = vmin.xlane.f32.xlu0 %v1281
        %v1283 = vpop.xlane.xlu0 %1282
        %v1284 = vcvt.f32.s32 %v1283
        %v1285 = vcvt.f32.s32 %v1279
        %v1286 = vshll.u32 %v1285, 16
        %v1287 = vadd.s32 %v1286, %v1284
        %v1288 = vand.u32 %v1129, 65535
        %v1289 = vshra.s32 %v1129, 16
        %v1290 = vcvt.s32.f32 %v1288
        %v1291 = vcvt.s32.f32 %v1289
        %1292 = vmin.xlane.f32.xlu0 %v1291
        %v1293 = vpop.xlane.xlu0 %1292
        %vm1294 = vcmp.eq.f32.partialorder %v1291, %v1293
        %v1295 = vsel %vm1294, %v1290, inf
        %1296 = vmin.xlane.f32.xlu0 %v1295
        %v1297 = vpop.xlane.xlu0 %1296
        %v1298 = vcvt.f32.s32 %v1297
        %v1299 = vcvt.f32.s32 %v1293
        %v1300 = vshll.u32 %v1299, 16
        %v1301 = vadd.s32 %v1300, %v1298
        %v1302 = vand.u32 %v1130, 65535
        %v1303 = vshra.s32 %v1130, 16
        %v1304 = vcvt.s32.f32 %v1302
        %v1305 = vcvt.s32.f32 %v1303
        %1306 = vmin.xlane.f32.xlu0 %v1305
        %v1307 = vpop.xlane.xlu0 %1306
        %vm1308 = vcmp.eq.f32.partialorder %v1305, %v1307
        %v1309 = vsel %vm1308, %v1304, inf
        %1310 = vmin.xlane.f32.xlu0 %v1309
        %v1311 = vpop.xlane.xlu0 %1310
        %v1312 = vcvt.f32.s32 %v1311
        %v1313 = vcvt.f32.s32 %v1307
        %v1314 = vshll.u32 %v1313, 16
        %v1315 = vadd.s32 %v1314, %v1312
        %v1316 = vand.u32 %v1131, 65535
        %v1317 = vshra.s32 %v1131, 16
        %v1318 = vcvt.s32.f32 %v1316
        %v1319 = vcvt.s32.f32 %v1317
        %1320 = vmin.xlane.f32.xlu0 %v1319
        %v1321 = vpop.xlane.xlu0 %1320
        %vm1322 = vcmp.eq.f32.partialorder %v1319, %v1321
        %v1323 = vsel %vm1322, %v1318, inf
        %1324 = vmin.xlane.f32.xlu0 %v1323
        %v1325 = vpop.xlane.xlu0 %1324
        %v1326 = vcvt.f32.s32 %v1325
        %v1327 = vcvt.f32.s32 %v1321
        %v1328 = vshll.u32 %v1327, 16
        %v1329 = vadd.s32 %v1328, %v1326
        %v1330 = vand.u32 %v1132, 65535
        %v1331 = vshra.s32 %v1132, 16
        %v1332 = vcvt.s32.f32 %v1330
        %v1333 = vcvt.s32.f32 %v1331
        %1334 = vmin.xlane.f32.xlu0 %v1333
        %v1335 = vpop.xlane.xlu0 %1334
        %vm1336 = vcmp.eq.f32.partialorder %v1333, %v1335
        %v1337 = vsel %vm1336, %v1332, inf
        %1338 = vmin.xlane.f32.xlu0 %v1337
        %v1339 = vpop.xlane.xlu0 %1338
        %v1340 = vcvt.f32.s32 %v1339
        %v1341 = vcvt.f32.s32 %v1335
        %v1342 = vshll.u32 %v1341, 16
        %v1343 = vadd.s32 %v1342, %v1340
        %v1344 = vand.u32 %v1133, 65535
        %v1345 = vshra.s32 %v1133, 16
        %v1346 = vcvt.s32.f32 %v1344
        %v1347 = vcvt.s32.f32 %v1345
        %1348 = vmin.xlane.f32.xlu0 %v1347
        %v1349 = vpop.xlane.xlu0 %1348
        %vm1350 = vcmp.eq.f32.partialorder %v1347, %v1349
        %v1351 = vsel %vm1350, %v1346, inf
        %1352 = vmin.xlane.f32.xlu0 %v1351
        %v1353 = vpop.xlane.xlu0 %1352
        %v1354 = vcvt.f32.s32 %v1353
        %v1355 = vcvt.f32.s32 %v1349
        %v1356 = vshll.u32 %v1355, 16
        %v1357 = vadd.s32 %v1356, %v1354
        %vm1358 = vcmp.gt.f32.partialorder %v750, %v781
        %vm1359 = vcmp.gt.f32.partialorder %v752, %v782
        %vm1360 = vcmp.gt.f32.partialorder %v754, %v783
        %vm1361 = vcmp.gt.f32.partialorder %v756, %v784
        %vm1362 = vcmp.gt.f32.partialorder %v758, %v785
        %vm1363 = vcmp.gt.f32.partialorder %v760, %v786
        %vm1364 = vcmp.gt.f32.partialorder %v762, %v787
        %vm1365 = vcmp.gt.f32.partialorder %v764, %v788
        %vm1366 = vcmp.gt.f32.partialorder %v766, %v789
        %vm1367 = vcmp.gt.f32.partialorder %v768, %v790
        %vm1368 = vcmp.gt.f32.partialorder %v770, %v791
        %vm1369 = vcmp.gt.f32.partialorder %v772, %v792
        %vm1370 = vcmp.gt.f32.partialorder %v774, %v793
        %vm1371 = vcmp.gt.f32.partialorder %v776, %v794
        %vm1372 = vcmp.gt.f32.partialorder %v778, %v795
        %vm1373 = vcmp.gt.f32.partialorder %v780, %v796
        %v1374 = vld [vmem:[#allocation5] sm:$0xff]
        %v1375 = vld [vmem:[#allocation5 + $0x8] sm:$0xff]
        %v1376 = vld [vmem:[#allocation5 + $0x10] sm:$0xff]
        %v1377 = vld [vmem:[#allocation5 + $0x18] sm:$0xff]
        %v1378 = vld [vmem:[#allocation5 + $0x20] sm:$0xff]
        %v1379 = vld [vmem:[#allocation5 + $0x28] sm:$0xff]
        %v1380 = vld [vmem:[#allocation5 + $0x30] sm:$0xff]
        %v1381 = vld [vmem:[#allocation5 + $0x38] sm:$0xff]
        %v1382 = vld [vmem:[#allocation5 + $0x40] sm:$0xff]
        %v1383 = vld [vmem:[#allocation5 + $0x48] sm:$0xff]
        %v1384 = vld [vmem:[#allocation5 + $0x50] sm:$0xff]
        %v1385 = vld [vmem:[#allocation5 + $0x58] sm:$0xff]
        %v1386 = vld [vmem:[#allocation5 + $0x60] sm:$0xff]
        %v1387 = vld [vmem:[#allocation5 + $0x68] sm:$0xff]
        %v1388 = vld [vmem:[#allocation5 + $0x70] sm:$0xff]
        %v1389 = vld [vmem:[#allocation5 + $0x78] sm:$0xff]
        %v1390 = vsel %vm1358, %v1147, %v1374
        %v1391 = vsel %vm1359, %v1161, %v1375
        %v1392 = vsel %vm1360, %v1175, %v1376
        %v1393 = vsel %vm1361, %v1189, %v1377
        %v1394 = vsel %vm1362, %v1203, %v1378
        %v1395 = vsel %vm1363, %v1217, %v1379
        %v1396 = vsel %vm1364, %v1231, %v1380
        %v1397 = vsel %vm1365, %v1245, %v1381
        %v1398 = vsel %vm1366, %v1259, %v1382
        %v1399 = vsel %vm1367, %v1273, %v1383
        %v1400 = vsel %vm1368, %v1287, %v1384
        %v1401 = vsel %vm1369, %v1301, %v1385
        %v1402 = vsel %vm1370, %v1315, %v1386
        %v1403 = vsel %vm1371, %v1329, %v1387
        %v1404 = vsel %vm1372, %v1343, %v1388
        %v1405 = vsel %vm1373, %v1357, %v1389
        %1406 = vst.msk [vmem:[#allocation5] sm:$0xff] %vm1069, %v1390
        %1407 = vst.msk [vmem:[#allocation5 + $0x8] sm:$0xff] %vm1069, %v1391
        %1408 = vst.msk [vmem:[#allocation5 + $0x10] sm:$0xff] %vm1069, %v1392
        %1409 = vst.msk [vmem:[#allocation5 + $0x18] sm:$0xff] %vm1069, %v1393
        %1410 = vst.msk [vmem:[#allocation5 + $0x20] sm:$0xff] %vm1069, %v1394
        %1411 = vst.msk [vmem:[#allocation5 + $0x28] sm:$0xff] %vm1069, %v1395
        %1412 = vst.msk [vmem:[#allocation5 + $0x30] sm:$0xff] %vm1069, %v1396
        %1413 = vst.msk [vmem:[#allocation5 + $0x38] sm:$0xff] %vm1069, %v1397
        %1414 = vst.msk [vmem:[#allocation5 + $0x40] sm:$0xff] %vm1069, %v1398
        %1415 = vst.msk [vmem:[#allocation5 + $0x48] sm:$0xff] %vm1069, %v1399
        %1416 = vst.msk [vmem:[#allocation5 + $0x50] sm:$0xff] %vm1069, %v1400
        %1417 = vst.msk [vmem:[#allocation5 + $0x58] sm:$0xff] %vm1069, %v1401
        %1418 = vst.msk [vmem:[#allocation5 + $0x60] sm:$0xff] %vm1069, %v1402
        %1419 = vst.msk [vmem:[#allocation5 + $0x68] sm:$0xff] %vm1069, %v1403
        %1420 = vst.msk [vmem:[#allocation5 + $0x70] sm:$0xff] %vm1069, %v1404
        %1421 = vst.msk [vmem:[#allocation5 + $0x78] sm:$0xff] %vm1069, %v1405
        %v1422 = vld [vmem:[#allocation4] sm:$0xff]
        %v1423 = vld [vmem:[#allocation4 + $0x8] sm:$0xff]
        %v1424 = vld [vmem:[#allocation4 + $0x10] sm:$0xff]
        %v1425 = vld [vmem:[#allocation4 + $0x18] sm:$0xff]
        %v1426 = vld [vmem:[#allocation4 + $0x20] sm:$0xff]
        %v1427 = vld [vmem:[#allocation4 + $0x28] sm:$0xff]
        %v1428 = vld [vmem:[#allocation4 + $0x30] sm:$0xff]
        %v1429 = vld [vmem:[#allocation4 + $0x38] sm:$0xff]
        %v1430 = vld [vmem:[#allocation4 + $0x40] sm:$0xff]
        %v1431 = vld [vmem:[#allocation4 + $0x48] sm:$0xff]
        %v1432 = vld [vmem:[#allocation4 + $0x50] sm:$0xff]
        %v1433 = vld [vmem:[#allocation4 + $0x58] sm:$0xff]
        %v1434 = vld [vmem:[#allocation4 + $0x60] sm:$0xff]
        %v1435 = vld [vmem:[#allocation4 + $0x68] sm:$0xff]
        %v1436 = vld [vmem:[#allocation4 + $0x70] sm:$0xff]
        %v1437 = vld [vmem:[#allocation4 + $0x78] sm:$0xff]
        %v1438 = vsel %vm685, %v717, 0.0
        %v1439 = vsel %vm686, %v718, 0.0
        %v1440 = vsel %vm687, %v719, 0.0
        %v1441 = vsel %vm688, %v720, 0.0
        %v1442 = vsel %vm689, %v721, 0.0
        %v1443 = vsel %vm690, %v722, 0.0
        %v1444 = vsel %vm691, %v723, 0.0
        %v1445 = vsel %vm692, %v724, 0.0
        %v1446 = vsel %vm693, %v725, 0.0
        %v1447 = vsel %vm694, %v726, 0.0
        %v1448 = vsel %vm695, %v727, 0.0
        %v1449 = vsel %vm696, %v728, 0.0
        %v1450 = vsel %vm697, %v729, 0.0
        %v1451 = vsel %vm698, %v730, 0.0
        %v1452 = vsel %vm699, %v731, 0.0
        %v1453 = vsel %vm700, %v732, 0.0
        %1454 = vadd.xlane.f32.xlu0 %v1438
        %v1455 = vpop.xlane.xlu0 %1454
        %1456 = vadd.xlane.f32.xlu0 %v1439
        %v1457 = vpop.xlane.xlu0 %1456
        %1458 = vadd.xlane.f32.xlu0 %v1440
        %v1459 = vpop.xlane.xlu0 %1458
        %1460 = vadd.xlane.f32.xlu0 %v1441
        %v1461 = vpop.xlane.xlu0 %1460
        %1462 = vadd.xlane.f32.xlu0 %v1442
        %v1463 = vpop.xlane.xlu0 %1462
        %1464 = vadd.xlane.f32.xlu0 %v1443
        %v1465 = vpop.xlane.xlu0 %1464
        %1466 = vadd.xlane.f32.xlu0 %v1444
        %v1467 = vpop.xlane.xlu0 %1466
        %1468 = vadd.xlane.f32.xlu0 %v1445
        %v1469 = vpop.xlane.xlu0 %1468
        %1470 = vadd.xlane.f32.xlu0 %v1446
        %v1471 = vpop.xlane.xlu0 %1470
        %1472 = vadd.xlane.f32.xlu0 %v1447
        %v1473 = vpop.xlane.xlu0 %1472
        %1474 = vadd.xlane.f32.xlu0 %v1448
        %v1475 = vpop.xlane.xlu0 %1474
        %1476 = vadd.xlane.f32.xlu0 %v1449
        %v1477 = vpop.xlane.xlu0 %1476
        %1478 = vadd.xlane.f32.xlu0 %v1450
        %v1479 = vpop.xlane.xlu0 %1478
        %1480 = vadd.xlane.f32.xlu0 %v1451
        %v1481 = vpop.xlane.xlu0 %1480
        %1482 = vadd.xlane.f32.xlu0 %v1452
        %v1483 = vpop.xlane.xlu0 %1482
        %1484 = vadd.xlane.f32.xlu0 %v1453
        %v1485 = vpop.xlane.xlu0 %1484
        %v1486 = vadd.f32 %v1422, %v1455
        %v1487 = vadd.f32 %v1423, %v1457
        %v1488 = vadd.f32 %v1424, %v1459
        %v1489 = vadd.f32 %v1425, %v1461
        %v1490 = vadd.f32 %v1426, %v1463
        %v1491 = vadd.f32 %v1427, %v1465
        %v1492 = vadd.f32 %v1428, %v1467
        %v1493 = vadd.f32 %v1429, %v1469
        %v1494 = vadd.f32 %v1430, %v1471
        %v1495 = vadd.f32 %v1431, %v1473
        %v1496 = vadd.f32 %v1432, %v1475
        %v1497 = vadd.f32 %v1433, %v1477
        %v1498 = vadd.f32 %v1434, %v1479
        %v1499 = vadd.f32 %v1435, %v1481
        %v1500 = vadd.f32 %v1436, %v1483
        %v1501 = vadd.f32 %v1437, %v1485
        %1502 = vst.msk [vmem:[#allocation4] sm:$0xff] %vm1069, %v1486
        %1503 = vst.msk [vmem:[#allocation4 + $0x8] sm:$0xff] %vm1069, %v1487
        %1504 = vst.msk [vmem:[#allocation4 + $0x10] sm:$0xff] %vm1069, %v1488
        %1505 = vst.msk [vmem:[#allocation4 + $0x18] sm:$0xff] %vm1069, %v1489
        %1506 = vst.msk [vmem:[#allocation4 + $0x20] sm:$0xff] %vm1069, %v1490
        %1507 = vst.msk [vmem:[#allocation4 + $0x28] sm:$0xff] %vm1069, %v1491
        %1508 = vst.msk [vmem:[#allocation4 + $0x30] sm:$0xff] %vm1069, %v1492
        %1509 = vst.msk [vmem:[#allocation4 + $0x38] sm:$0xff] %vm1069, %v1493
        %1510 = vst.msk [vmem:[#allocation4 + $0x40] sm:$0xff] %vm1069, %v1494
        %1511 = vst.msk [vmem:[#allocation4 + $0x48] sm:$0xff] %vm1069, %v1495
        %1512 = vst.msk [vmem:[#allocation4 + $0x50] sm:$0xff] %vm1069, %v1496
        %1513 = vst.msk [vmem:[#allocation4 + $0x58] sm:$0xff] %vm1069, %v1497
        %1514 = vst.msk [vmem:[#allocation4 + $0x60] sm:$0xff] %vm1069, %v1498
        %1515 = vst.msk [vmem:[#allocation4 + $0x68] sm:$0xff] %vm1069, %v1499
        %1516 = vst.msk [vmem:[#allocation4 + $0x70] sm:$0xff] %vm1069, %v1500
        %1517 = vst.msk [vmem:[#allocation4 + $0x78] sm:$0xff] %vm1069, %v1501
        %p1518 = scmp.eq.s32.totalorder %s27, 3
        // Predicated region
        $region78: #{tpu_custom_call.1} parent=68 // pred_check
          %p1519 = pneg %p1518
        $region79: #{tpu_custom_call.1} parent=68 // pred_check_branch
          %1521 = sbr.rel (%p1519) target = $region81
        $region80: #{tpu_custom_call.1} parent=68 // pred_region
          %v1522 = vld [vmem:[#allocation2] sm:$0xff]
          %v1523 = vld [vmem:[#allocation2 + $0x8] sm:$0xff]
          %v1524 = vld [vmem:[#allocation2 + $0x10] sm:$0xff]
          %v1525 = vld [vmem:[#allocation2 + $0x18] sm:$0xff]
          %v1526 = vld [vmem:[#allocation2 + $0x20] sm:$0xff]
          %v1527 = vld [vmem:[#allocation2 + $0x28] sm:$0xff]
          %v1528 = vld [vmem:[#allocation2 + $0x30] sm:$0xff]
          %v1529 = vld [vmem:[#allocation2 + $0x38] sm:$0xff]
          %v1530 = vld [vmem:[#allocation2 + $0x40] sm:$0xff]
          %v1531 = vld [vmem:[#allocation2 + $0x48] sm:$0xff]
          %v1532 = vld [vmem:[#allocation2 + $0x50] sm:$0xff]
          %v1533 = vld [vmem:[#allocation2 + $0x58] sm:$0xff]
          %v1534 = vld [vmem:[#allocation2 + $0x60] sm:$0xff]
          %v1535 = vld [vmem:[#allocation2 + $0x68] sm:$0xff]
          %v1536 = vld [vmem:[#allocation2 + $0x70] sm:$0xff]
          %v1537 = vld [vmem:[#allocation2 + $0x78] sm:$0xff]
          %v1538 = vld [vmem:[#allocation3] sm:$0xff]
          %v1539 = vld [vmem:[#allocation3 + $0x8] sm:$0xff]
          %v1540 = vld [vmem:[#allocation3 + $0x10] sm:$0xff]
          %v1541 = vld [vmem:[#allocation3 + $0x18] sm:$0xff]
          %v1542 = vld [vmem:[#allocation3 + $0x20] sm:$0xff]
          %v1543 = vld [vmem:[#allocation3 + $0x28] sm:$0xff]
          %v1544 = vld [vmem:[#allocation3 + $0x30] sm:$0xff]
          %v1545 = vld [vmem:[#allocation3 + $0x38] sm:$0xff]
          %v1546 = vld [vmem:[#allocation3 + $0x40] sm:$0xff]
          %v1547 = vld [vmem:[#allocation3 + $0x48] sm:$0xff]
          %v1548 = vld [vmem:[#allocation3 + $0x50] sm:$0xff]
          %v1549 = vld [vmem:[#allocation3 + $0x58] sm:$0xff]
          %v1550 = vld [vmem:[#allocation3 + $0x60] sm:$0xff]
          %v1551 = vld [vmem:[#allocation3 + $0x68] sm:$0xff]
          %v1552 = vld [vmem:[#allocation3 + $0x70] sm:$0xff]
          %v1553 = vld [vmem:[#allocation3 + $0x78] sm:$0xff]
          %v1554 = vlog2.pop %v1538
          %v1555 = vmul.f32 %v1554, 0.6931472
          %v1556 = vlog2.pop %v1539
          %v1557 = vmul.f32 %v1556, 0.6931472
          %v1558 = vlog2.pop %v1540
          %v1559 = vmul.f32 %v1558, 0.6931472
          %v1560 = vlog2.pop %v1541
          %v1561 = vmul.f32 %v1560, 0.6931472
          %v1562 = vlog2.pop %v1542
          %v1563 = vmul.f32 %v1562, 0.6931472
          %v1564 = vlog2.pop %v1543
          %v1565 = vmul.f32 %v1564, 0.6931472
          %v1566 = vlog2.pop %v1544
          %v1567 = vmul.f32 %v1566, 0.6931472
          %v1568 = vlog2.pop %v1545
          %v1569 = vmul.f32 %v1568, 0.6931472
          %v1570 = vlog2.pop %v1546
          %v1571 = vmul.f32 %v1570, 0.6931472
          %v1572 = vlog2.pop %v1547
          %v1573 = vmul.f32 %v1572, 0.6931472
          %v1574 = vlog2.pop %v1548
          %v1575 = vmul.f32 %v1574, 0.6931472
          %v1576 = vlog2.pop %v1549
          %v1577 = vmul.f32 %v1576, 0.6931472
          %v1578 = vlog2.pop %v1550
          %v1579 = vmul.f32 %v1578, 0.6931472
          %v1580 = vlog2.pop %v1551
          %v1581 = vmul.f32 %v1580, 0.6931472
          %v1582 = vlog2.pop %v1552
          %v1583 = vmul.f32 %v1582, 0.6931472
          %v1584 = vlog2.pop %v1553
          %v1585 = vmul.f32 %v1584, 0.6931472
          %v1586 = vadd.f32 %v1522, %v1555
          %v1587 = vadd.f32 %v1523, %v1557
          %v1588 = vadd.f32 %v1524, %v1559
          %v1589 = vadd.f32 %v1525, %v1561
          %v1590 = vadd.f32 %v1526, %v1563
          %v1591 = vadd.f32 %v1527, %v1565
          %v1592 = vadd.f32 %v1528, %v1567
          %v1593 = vadd.f32 %v1529, %v1569
          %v1594 = vadd.f32 %v1530, %v1571
          %v1595 = vadd.f32 %v1531, %v1573
          %v1596 = vadd.f32 %v1532, %v1575
          %v1597 = vadd.f32 %v1533, %v1577
          %v1598 = vadd.f32 %v1534, %v1579
          %v1599 = vadd.f32 %v1535, %v1581
          %v1600 = vadd.f32 %v1536, %v1583
          %v1601 = vadd.f32 %v1537, %v1585
          %v1602 = vld [vmem:[#allocation4] sm:$0xff]
          %v1603 = vld [vmem:[#allocation4 + $0x8] sm:$0xff]
          %v1604 = vld [vmem:[#allocation4 + $0x10] sm:$0xff]
          %v1605 = vld [vmem:[#allocation4 + $0x18] sm:$0xff]
          %v1606 = vld [vmem:[#allocation4 + $0x20] sm:$0xff]
          %v1607 = vld [vmem:[#allocation4 + $0x28] sm:$0xff]
          %v1608 = vld [vmem:[#allocation4 + $0x30] sm:$0xff]
          %v1609 = vld [vmem:[#allocation4 + $0x38] sm:$0xff]
          %v1610 = vld [vmem:[#allocation4 + $0x40] sm:$0xff]
          %v1611 = vld [vmem:[#allocation4 + $0x48] sm:$0xff]
          %v1612 = vld [vmem:[#allocation4 + $0x50] sm:$0xff]
          %v1613 = vld [vmem:[#allocation4 + $0x58] sm:$0xff]
          %v1614 = vld [vmem:[#allocation4 + $0x60] sm:$0xff]
          %v1615 = vld [vmem:[#allocation4 + $0x68] sm:$0xff]
          %v1616 = vld [vmem:[#allocation4 + $0x70] sm:$0xff]
          %v1617 = vld [vmem:[#allocation4 + $0x78] sm:$0xff]
          %v1618 = vsub.f32 %v1586, %v1602
          %v1619 = vsub.f32 %v1587, %v1603
          %v1620 = vsub.f32 %v1588, %v1604
          %v1621 = vsub.f32 %v1589, %v1605
          %v1622 = vsub.f32 %v1590, %v1606
          %v1623 = vsub.f32 %v1591, %v1607
          %v1624 = vsub.f32 %v1592, %v1608
          %v1625 = vsub.f32 %v1593, %v1609
          %v1626 = vsub.f32 %v1594, %v1610
          %v1627 = vsub.f32 %v1595, %v1611
          %v1628 = vsub.f32 %v1596, %v1612
          %v1629 = vsub.f32 %v1597, %v1613
          %v1630 = vsub.f32 %v1598, %v1614
          %v1631 = vsub.f32 %v1599, %v1615
          %v1632 = vsub.f32 %v1600, %v1616
          %v1633 = vsub.f32 %v1601, %v1617
          %1635 = vset.pattern.permute.xlu0 0
          %1636 = vperm.xlu0 %1635, %v1618
          %v1637 = vpop.permute.xlu0 %1636
          %1640 = vset.pattern.permute.xlu0 0
          %1641 = vperm.xlu0 %1640, %v1619
          %v1642 = vpop.permute.xlu0 %1641
          %1645 = vset.pattern.permute.xlu0 0
          %1646 = vperm.xlu0 %1645, %v1620
          %v1647 = vpop.permute.xlu0 %1646
          %1650 = vset.pattern.permute.xlu0 0
          %1651 = vperm.xlu0 %1650, %v1621
          %v1652 = vpop.permute.xlu0 %1651
          %1655 = vset.pattern.permute.xlu0 0
          %1656 = vperm.xlu0 %1655, %v1622
          %v1657 = vpop.permute.xlu0 %1656
          %1660 = vset.pattern.permute.xlu0 0
          %1661 = vperm.xlu0 %1660, %v1623
          %v1662 = vpop.permute.xlu0 %1661
          %1665 = vset.pattern.permute.xlu0 0
          %1666 = vperm.xlu0 %1665, %v1624
          %v1667 = vpop.permute.xlu0 %1666
          %1670 = vset.pattern.permute.xlu0 0
          %1671 = vperm.xlu0 %1670, %v1625
          %v1672 = vpop.permute.xlu0 %1671
          %1675 = vset.pattern.permute.xlu0 0
          %1676 = vperm.xlu0 %1675, %v1626
          %v1677 = vpop.permute.xlu0 %1676
          %1680 = vset.pattern.permute.xlu0 0
          %1681 = vperm.xlu0 %1680, %v1627
          %v1682 = vpop.permute.xlu0 %1681
          %1685 = vset.pattern.permute.xlu0 0
          %1686 = vperm.xlu0 %1685, %v1628
          %v1687 = vpop.permute.xlu0 %1686
          %1690 = vset.pattern.permute.xlu0 0
          %1691 = vperm.xlu0 %1690, %v1629
          %v1692 = vpop.permute.xlu0 %1691
          %1695 = vset.pattern.permute.xlu0 0
          %1696 = vperm.xlu0 %1695, %v1630
          %v1697 = vpop.permute.xlu0 %1696
          %1700 = vset.pattern.permute.xlu0 0
          %1701 = vperm.xlu0 %1700, %v1631
          %v1702 = vpop.permute.xlu0 %1701
          %1705 = vset.pattern.permute.xlu0 0
          %1706 = vperm.xlu0 %1705, %v1632
          %v1707 = vpop.permute.xlu0 %1706
          %1710 = vset.pattern.permute.xlu0 0
          %1711 = vperm.xlu0 %1710, %v1633
          %v1712 = vpop.permute.xlu0 %1711
          %1714 = vst [vmem:[%s314] sm:$0xff] %v1637
          %1715 = vst [vmem:[%s314 + $0x8] sm:$0xff] %v1642
          %1716 = vst [vmem:[%s314 + $0x10] sm:$0xff] %v1647
          %1717 = vst [vmem:[%s314 + $0x18] sm:$0xff] %v1652
          %1718 = vst [vmem:[%s314 + $0x20] sm:$0xff] %v1657
          %1719 = vst [vmem:[%s314 + $0x28] sm:$0xff] %v1662
          %1720 = vst [vmem:[%s314 + $0x30] sm:$0xff] %v1667
          %1721 = vst [vmem:[%s314 + $0x38] sm:$0xff] %v1672
          %1722 = vst [vmem:[%s314 + $0x40] sm:$0xff] %v1677
          %1723 = vst [vmem:[%s314 + $0x48] sm:$0xff] %v1682
          %1724 = vst [vmem:[%s314 + $0x50] sm:$0xff] %v1687
          %1725 = vst [vmem:[%s314 + $0x58] sm:$0xff] %v1692
          %1726 = vst [vmem:[%s314 + $0x60] sm:$0xff] %v1697
          %1727 = vst [vmem:[%s314 + $0x68] sm:$0xff] %v1702
          %1728 = vst [vmem:[%s314 + $0x70] sm:$0xff] %v1707
          %1729 = vst [vmem:[%s314 + $0x78] sm:$0xff] %v1712
          %v1730 = vld [vmem:[#allocation5] sm:$0xff]
          %v1731 = vld [vmem:[#allocation5 + $0x8] sm:$0xff]
          %v1732 = vld [vmem:[#allocation5 + $0x10] sm:$0xff]
          %v1733 = vld [vmem:[#allocation5 + $0x18] sm:$0xff]
          %v1734 = vld [vmem:[#allocation5 + $0x20] sm:$0xff]
          %v1735 = vld [vmem:[#allocation5 + $0x28] sm:$0xff]
          %v1736 = vld [vmem:[#allocation5 + $0x30] sm:$0xff]
          %v1737 = vld [vmem:[#allocation5 + $0x38] sm:$0xff]
          %v1738 = vld [vmem:[#allocation5 + $0x40] sm:$0xff]
          %v1739 = vld [vmem:[#allocation5 + $0x48] sm:$0xff]
          %v1740 = vld [vmem:[#allocation5 + $0x50] sm:$0xff]
          %v1741 = vld [vmem:[#allocation5 + $0x58] sm:$0xff]
          %v1742 = vld [vmem:[#allocation5 + $0x60] sm:$0xff]
          %v1743 = vld [vmem:[#allocation5 + $0x68] sm:$0xff]
          %v1744 = vld [vmem:[#allocation5 + $0x70] sm:$0xff]
          %v1745 = vld [vmem:[#allocation5 + $0x78] sm:$0xff]
          %vm1746 = vcmp.eq.s32.totalorder %v1730, %v616
          %vm1747 = vcmp.eq.s32.totalorder %v1731, %v617
          %vm1748 = vcmp.eq.s32.totalorder %v1732, %v618
          %vm1749 = vcmp.eq.s32.totalorder %v1733, %v619
          %vm1750 = vcmp.eq.s32.totalorder %v1734, %v620
          %vm1751 = vcmp.eq.s32.totalorder %v1735, %v621
          %vm1752 = vcmp.eq.s32.totalorder %v1736, %v622
          %vm1753 = vcmp.eq.s32.totalorder %v1737, %v623
          %vm1754 = vcmp.eq.s32.totalorder %v1738, %v624
          %vm1755 = vcmp.eq.s32.totalorder %v1739, %v625
          %vm1756 = vcmp.eq.s32.totalorder %v1740, %v626
          %vm1757 = vcmp.eq.s32.totalorder %v1741, %v627
          %vm1758 = vcmp.eq.s32.totalorder %v1742, %v628
          %vm1759 = vcmp.eq.s32.totalorder %v1743, %v629
          %vm1760 = vcmp.eq.s32.totalorder %v1744, %v630
          %vm1761 = vcmp.eq.s32.totalorder %v1745, %v631
          %v1762 = vsel %vm1746, 1, 0
          %v1763 = vsel %vm1747, 1, 0
          %v1764 = vsel %vm1748, 1, 0
          %v1765 = vsel %vm1749, 1, 0
          %v1766 = vsel %vm1750, 1, 0
          %v1767 = vsel %vm1751, 1, 0
          %v1768 = vsel %vm1752, 1, 0
          %v1769 = vsel %vm1753, 1, 0
          %v1770 = vsel %vm1754, 1, 0
          %v1771 = vsel %vm1755, 1, 0
          %v1772 = vsel %vm1756, 1, 0
          %v1773 = vsel %vm1757, 1, 0
          %v1774 = vsel %vm1758, 1, 0
          %v1775 = vsel %vm1759, 1, 0
          %v1776 = vsel %vm1760, 1, 0
          %v1777 = vsel %vm1761, 1, 0
          %v1778 = vcvt.s32.f32 %v1762
          %v1779 = vcvt.s32.f32 %v1763
          %v1780 = vcvt.s32.f32 %v1764
          %v1781 = vcvt.s32.f32 %v1765
          %v1782 = vcvt.s32.f32 %v1766
          %v1783 = vcvt.s32.f32 %v1767
          %v1784 = vcvt.s32.f32 %v1768
          %v1785 = vcvt.s32.f32 %v1769
          %v1786 = vcvt.s32.f32 %v1770
          %v1787 = vcvt.s32.f32 %v1771
          %v1788 = vcvt.s32.f32 %v1772
          %v1789 = vcvt.s32.f32 %v1773
          %v1790 = vcvt.s32.f32 %v1774
          %v1791 = vcvt.s32.f32 %v1775
          %v1792 = vcvt.s32.f32 %v1776
          %v1793 = vcvt.s32.f32 %v1777
          %1795 = vset.pattern.permute.xlu0 0
          %1796 = vperm.xlu0 %1795, %v1778
          %v1797 = vpop.permute.xlu0 %1796
          %1800 = vset.pattern.permute.xlu0 0
          %1801 = vperm.xlu0 %1800, %v1779
          %v1802 = vpop.permute.xlu0 %1801
          %1805 = vset.pattern.permute.xlu0 0
          %1806 = vperm.xlu0 %1805, %v1780
          %v1807 = vpop.permute.xlu0 %1806
          %1810 = vset.pattern.permute.xlu0 0
          %1811 = vperm.xlu0 %1810, %v1781
          %v1812 = vpop.permute.xlu0 %1811
          %1815 = vset.pattern.permute.xlu0 0
          %1816 = vperm.xlu0 %1815, %v1782
          %v1817 = vpop.permute.xlu0 %1816
          %1820 = vset.pattern.permute.xlu0 0
          %1821 = vperm.xlu0 %1820, %v1783
          %v1822 = vpop.permute.xlu0 %1821
          %1825 = vset.pattern.permute.xlu0 0
          %1826 = vperm.xlu0 %1825, %v1784
          %v1827 = vpop.permute.xlu0 %1826
          %1830 = vset.pattern.permute.xlu0 0
          %1831 = vperm.xlu0 %1830, %v1785
          %v1832 = vpop.permute.xlu0 %1831
          %1835 = vset.pattern.permute.xlu0 0
          %1836 = vperm.xlu0 %1835, %v1786
          %v1837 = vpop.permute.xlu0 %1836
          %1840 = vset.pattern.permute.xlu0 0
          %1841 = vperm.xlu0 %1840, %v1787
          %v1842 = vpop.permute.xlu0 %1841
          %1845 = vset.pattern.permute.xlu0 0
          %1846 = vperm.xlu0 %1845, %v1788
          %v1847 = vpop.permute.xlu0 %1846
          %1850 = vset.pattern.permute.xlu0 0
          %1851 = vperm.xlu0 %1850, %v1789
          %v1852 = vpop.permute.xlu0 %1851
          %1855 = vset.pattern.permute.xlu0 0
          %1856 = vperm.xlu0 %1855, %v1790
          %v1857 = vpop.permute.xlu0 %1856
          %1860 = vset.pattern.permute.xlu0 0
          %1861 = vperm.xlu0 %1860, %v1791
          %v1862 = vpop.permute.xlu0 %1861
          %1865 = vset.pattern.permute.xlu0 0
          %1866 = vperm.xlu0 %1865, %v1792
          %v1867 = vpop.permute.xlu0 %1866
          %1870 = vset.pattern.permute.xlu0 0
          %1871 = vperm.xlu0 %1870, %v1793
          %v1872 = vpop.permute.xlu0 %1871
          %1874 = vst [vmem:[%s321] sm:$0xff] %v1797
          %1875 = vst [vmem:[%s321 + $0x8] sm:$0xff] %v1802
          %1876 = vst [vmem:[%s321 + $0x10] sm:$0xff] %v1807
          %1877 = vst [vmem:[%s321 + $0x18] sm:$0xff] %v1812
          %1878 = vst [vmem:[%s321 + $0x20] sm:$0xff] %v1817
          %1879 = vst [vmem:[%s321 + $0x28] sm:$0xff] %v1822
          %1880 = vst [vmem:[%s321 + $0x30] sm:$0xff] %v1827
          %1881 = vst [vmem:[%s321 + $0x38] sm:$0xff] %v1832
          %1882 = vst [vmem:[%s321 + $0x40] sm:$0xff] %v1837
          %1883 = vst [vmem:[%s321 + $0x48] sm:$0xff] %v1842
          %1884 = vst [vmem:[%s321 + $0x50] sm:$0xff] %v1847
          %1885 = vst [vmem:[%s321 + $0x58] sm:$0xff] %v1852
          %1886 = vst [vmem:[%s321 + $0x60] sm:$0xff] %v1857
          %1887 = vst [vmem:[%s321 + $0x68] sm:$0xff] %v1862
          %1888 = vst [vmem:[%s321 + $0x70] sm:$0xff] %v1867
          %1889 = vst [vmem:[%s321 + $0x78] sm:$0xff] %v1872
        $region81: #{tpu_custom_call.1} parent=68 // pred_fallthru
          _
        %s1890 = sand.u32 %s120, 1
        %s1891 = scalar_lea.sflag [#allocation8], %s1890
        %s1892 = sand.u32 %s120, 1
        %s1893 = smul.addr %s1892, 128
        %s1894 = scalar_lea.vmem [#allocation7], %s1893
        %s1895 = sand.u32 %s146, 1
        %s1896 = scalar_lea.sflag [#allocation10], %s1895
        %s1897 = sand.u32 %s146, 1
        %s1898 = smul.addr %s1897, 128
        %s1899 = scalar_lea.vmem [#allocation9], %s1898
        // Predicated region
        $region82: #{tpu_custom_call.1} parent=68 // pred_check
          %p1900 = pneg %p130
        $region83: #{tpu_custom_call.1} parent=68 // pred_check_branch
          %1902 = sbr.rel (%p1900) target = $region85
        $region84: #{tpu_custom_call.1} parent=68 // pred_region
          %s1903 = smul.u32 16, %s26
          %s1905 = ssub.s32 2048, 2048
          %1906 = vsyncadd %s1891, %s1905
          %s1907 = smul.addr %s1903, 128
          %s1908 = scalar_lea.hbm %s3, %s1907
          %s1909 = sshll.u32 %s1894, 4
          %s1910 = int_to_ptr.vmem [resolvable:$true] %s1909
          %1915 = dma.vmem_to_hbm [thread:$0]  %s1910, 2048, %s1908, %s1891, 128, 128, 8
        $region85: #{tpu_custom_call.1} parent=68 // pred_fallthru
          _
        // Predicated region
        $region86: #{tpu_custom_call.1} parent=68 // pred_check
          %p1916 = pneg %p156
        $region87: #{tpu_custom_call.1} parent=68 // pred_check_branch
          %1918 = sbr.rel (%p1916) target = $region89
        $region88: #{tpu_custom_call.1} parent=68 // pred_region
          %s1919 = smul.u32 16, %s26
          %s1921 = ssub.s32 2048, 2048
          %1922 = vsyncadd %s1896, %s1921
          %s1923 = smul.addr %s1919, 128
          %s1924 = scalar_lea.hbm %s4, %s1923
          %s1925 = sshll.u32 %s1899, 4
          %s1926 = int_to_ptr.vmem [resolvable:$true] %s1925
          %1931 = dma.vmem_to_hbm [thread:$0]  %s1926, 2048, %s1924, %s1896, 128, 128, 8
        $region89: #{tpu_custom_call.1} parent=68 // pred_fallthru
          _
      $region69: #{tpu_custom_call.1} parent=5 // pred_fallthru
        _
      %p1932 = scmp.le.s32.totalorder 2, %s17
      // Predicated region
      $region90: #{tpu_custom_call.1} parent=5 // pred_check
        %p1933 = pneg %p1932
      $region91: #{tpu_custom_call.1} parent=5 // pred_check_branch
        %1935 = sbr.rel (%p1933) target = $region93
      $region92: #{tpu_custom_call.1} parent=5 // pred_region
        %s1936 = ssub.s32 %s17, 2
        // Predicated region
        $region94: #{tpu_custom_call.1} parent=92 // pred_check
          %p1937 = pneg %p136
        $region95: #{tpu_custom_call.1} parent=92 // pred_check_branch
          %1939 = sbr.rel (%p1937) target = $region97
        $region96: #{tpu_custom_call.1} parent=92 // pred_region
          %s1940 = sand.u32 %s121, 1
          %s1941 = scalar_lea.sflag [#allocation8], %s1940
          %s1942 = sand.u32 %s121, 1
          %s1943 = smul.addr %s1942, 128
          %s1944 = scalar_lea.vmem [#allocation7], %s1943
          %1945 = dma.done %s1941, 2048
        $region97: #{tpu_custom_call.1} parent=92 // pred_fallthru
          _
        // Predicated region
        $region98: #{tpu_custom_call.1} parent=92 // pred_check
          %p1946 = pneg %p162
        $region99: #{tpu_custom_call.1} parent=92 // pred_check_branch
          %1948 = sbr.rel (%p1946) target = $region101
        $region100: #{tpu_custom_call.1} parent=92 // pred_region
          %s1949 = sand.u32 %s147, 1
          %s1950 = scalar_lea.sflag [#allocation10], %s1949
          %s1951 = sand.u32 %s147, 1
          %s1952 = smul.addr %s1951, 128
          %s1953 = scalar_lea.vmem [#allocation9], %s1952
          %1954 = dma.done %s1950, 2048
        $region101: #{tpu_custom_call.1} parent=92 // pred_fallthru
          _
      $region93: #{tpu_custom_call.1} parent=5 // pred_fallthru
        _
    $region6: #{tpu_custom_call.1} parent=1 // loop_footer
      %s21 = sadd.s32 1, %s17
    $region7: #{tpu_custom_call.1} parent=1 // loop_footer_branch
      %16 = sbr.rel target = $region3
    $region8: #{tpu_custom_call.1} parent=1 // loop_exit
      _
    %1955 = vsyncpa [#allocation8], 1
    %s1956 = scalar_lea.sflag [#allocation8], 1
    %1957 = vsyncpa %s1956, 1
    %1958 = vsyncpa [#allocation10], 1
    %s1959 = scalar_lea.sflag [#allocation10], 1
    %1960 = vsyncpa %s1959, 1

</llo_original>
